<compile_context>
chip_gen: v6e
topology: v6e:2x2x1
jax: 0.10.0
libtpu: 0.0.40
codegen_flags: <defaults>
</compile_context>

<pallas_src>
import functools

import jax
import jax.numpy as jnp
from jax import lax
from jax.experimental import pallas as pl
from jax.experimental.pallas import tpu as pltpu


def _round_up(x, m):
    return (x + m - 1) // m * m


# ----------------------------- fused forward kernel ---------------------------------
def _fused_kernel(x_ref, wih_ref, whh_ref, bias_ref, w1_ref, b1_ref, w2_ref, b2_ref,
                  out_ref, gx_ref, h_all_ref, *, T, Bp, unroll):
    """One invocation computes the full forward:

      prologue : gate_x = x @ W_ih^T + (b_ih + b_hh)        (M = T*Bp batched matmul)
      loop     : LSTM recurrence over T (only h @ W_hh^T stays serial)
      epilogue : logits = (h_all @ W1^T + b1) @ W2^T + b2    (M = T*Bp batched matmuls)

    Shapes:
      x_ref     (T*Bp, Ep)
      wih_ref   (Ep, 4Hp)    whh_ref (Hp, 4Hp)    bias_ref (1, 4Hp)
      w1_ref    (Hp, Ep)     b1_ref  (1, Ep)
      w2_ref    (Ep, Vp)     b2_ref  (1, Vp)
      out_ref   (T*Bp, Vp)
      gx_ref    (T*Bp, 4Hp)  VMEM scratch
      h_all_ref (T*Bp, Hp)   VMEM scratch
    """
    Hp = whh_ref.shape[0]

    # --- prologue: hoisted input transform, one big MXU matmul (M = T*Bp) ---
    gx_ref[...] = (jnp.dot(x_ref[...], wih_ref[...],
                           preferred_element_type=jnp.float32) + bias_ref[...])

    whh = whh_ref[...]                                   # loaded once, loop-invariant

    def step(t, carry):
        h, c = carry
        off = pl.multiple_of(t * Bp, Bp)                 # sublane-aligned row offset
        gates = gx_ref[pl.ds(off, Bp), :] + jnp.dot(
            h, whh, preferred_element_type=jnp.float32)
        # PyTorch LSTM gate order: input, forget, cell(g), output.
        # Hp is a multiple of 128 -> each gate slice is a lane-aligned chunk.
        i = jax.nn.sigmoid(gates[:, 0 * Hp:1 * Hp])
        f = jax.nn.sigmoid(gates[:, 1 * Hp:2 * Hp])
        g = jnp.tanh(gates[:, 2 * Hp:3 * Hp])
        o = jax.nn.sigmoid(gates[:, 3 * Hp:4 * Hp])
        c_new = f * c + i * g
        h_new = o * jnp.tanh(c_new)
        h_all_ref[pl.ds(off, Bp), :] = h_new
        return (h_new, c_new)

    # hidden_state=None in the PyTorch forward -> zero-initialised (h0, c0).
    zeros = jnp.zeros((Bp, Hp), jnp.float32)
    lax.fori_loop(0, T, step, (zeros, zeros), unroll=unroll)

    # --- epilogue: fc1 + fc2 projection, batched over all T*Bp rows (>90% of FLOPs) ---
    y1 = (jnp.dot(h_all_ref[...], w1_ref[...],
                  preferred_element_type=jnp.float32) + b1_ref[...])
    out_ref[...] = (jnp.dot(y1, w2_ref[...],
                            preferred_element_type=jnp.float32) + b2_ref[...])


# ------------------------ one-time parameter repacking (hoisted) ---------------------
def pack_params(params):
    """TPU-friendly repacking, run ONCE at init (not inside the jitted forward).

    Lane dims padded to multiples of 128; per-gate padding preserves the PyTorch
    i,f,g,o block layout of the LSTM weights.
    """
    emb = params["embedding"].astype(jnp.float32)        # (V, E)
    V, E = emb.shape
    H = params["w_hh"].shape[1]
    Ep = _round_up(E, 128)
    Hp = _round_up(H, 128)
    Vp = _round_up(V, 128)
    f32 = jnp.float32

    def pad_gate_w(w, k_pad):                            # (4H, K) -> (K_pad, 4*Hp)
        K = w.shape[1]
        w4 = w.reshape(4, H, K)
        w4 = jnp.pad(w4, ((0, 0), (0, Hp - H), (0, k_pad - K)))
        return w4.reshape(4 * Hp, k_pad).T.astype(f32)

    def pad_gate_b(b):                                   # (4H,) -> (1, 4*Hp)
        b4 = jnp.pad(b.reshape(4, H), ((0, 0), (0, Hp - H)))
        return b4.reshape(1, 4 * Hp).astype(f32)

    packed = {
        "emb_p": jnp.pad(emb, ((0, 0), (0, Ep - E))),                            # (V, Ep)
        "wih_t": pad_gate_w(params["w_ih"], Ep),                                 # (Ep, 4Hp)
        "whh_t": pad_gate_w(params["w_hh"], Hp),                                 # (Hp, 4Hp)
        "bias": pad_gate_b(params["b_ih"] + params["b_hh"]),                     # (1, 4Hp)
        "w1_t": jnp.pad(params["fc1_w"].T, ((0, Hp - H), (0, Ep - E))).astype(f32),
        "b1": jnp.pad(params["fc1_b"], (0, Ep - E)).reshape(1, Ep).astype(f32),
        "w2_t": jnp.pad(params["fc2_w"].T, ((0, Ep - E), (0, Vp - V))).astype(f32),
        "b2": jnp.pad(params["fc2_b"], (0, Vp - V)).reshape(1, Vp).astype(f32),
    }
    return packed


# --------------------------------- forward pass --------------------------------------
def stackoverflow_forward(tokens, packed):
    """tokens: (T, B) int32.  Returns (T, V, B) float32 logits (matches PyTorch)."""
    T, B = tokens.shape
    Bp = _round_up(max(B, 8), 8)
    emb_p = packed["emb_p"]
    V, Ep = emb_p.shape                                  # V unpadded, Ep padded
    Hp = packed["w1_t"].shape[0]
    Vp = packed["w2_t"].shape[1]

    # Embedding gather (XLA glue).  Pad the batch with token 0; padded batch rows are
    # independent in the LSTM and get sliced off at the end.
    tokens_p = jnp.pad(tokens, ((0, 0), (0, Bp - B)))                 # (T, Bp)
    x = jnp.take(emb_p, tokens_p, axis=0).reshape(T * Bp, Ep)         # (T*Bp, Ep)

    unroll = T if T <= 16 else 4                         # cap unroll for larger T
    kernel = functools.partial(_fused_kernel, T=T, Bp=Bp, unroll=unroll)

    logits_flat = pl.pallas_call(
        kernel,
        out_shape=jax.ShapeDtypeStruct((T * Bp, Vp), jnp.float32),
        grid=(1,),
        in_specs=[
            pl.BlockSpec((T * Bp, Ep), lambda i: (0, 0)),             # embeds (flat T*Bp)
            pl.BlockSpec((Ep, 4 * Hp), lambda i: (0, 0)),             # W_ih^T
            pl.BlockSpec((Hp, 4 * Hp), lambda i: (0, 0)),             # W_hh^T
            pl.BlockSpec((1, 4 * Hp), lambda i: (0, 0)),              # b_ih + b_hh
            pl.BlockSpec((Hp, Ep), lambda i: (0, 0)),                 # fc1 W^T
            pl.BlockSpec((1, Ep), lambda i: (0, 0)),                  # fc1 b
            pl.BlockSpec((Ep, Vp), lambda i: (0, 0)),                 # fc2 W^T
            pl.BlockSpec((1, Vp), lambda i: (0, 0)),                  # fc2 b
        ],
        out_specs=pl.BlockSpec((T * Bp, Vp), lambda i: (0, 0)),       # lane-dense slab
        scratch_shapes=[
            pltpu.VMEM((T * Bp, 4 * Hp), jnp.float32),                # gate_x (VMEM only)
            pltpu.VMEM((T * Bp, Hp), jnp.float32),                    # h_all  (VMEM only)
        ],
        compiler_params=pltpu.CompilerParams(
            dimension_semantics=("arbitrary",),
            vmem_limit_bytes=32 * 1024 * 1024),
    )(x, packed["wih_t"], packed["whh_t"], packed["bias"],
      packed["w1_t"], packed["b1"], packed["w2_t"], packed["b2"])

    logits = logits_flat.reshape(T, Bp, Vp)[:, :B, :V]   # drop batch / vocab padding
    # torch.transpose(output, 1, 2): (T, B, V) -> (T, V, B) -- done in XLA, not in-kernel.
    return jnp.transpose(logits, (0, 2, 1))


# --------------- pure-JAX reference (for correctness check) --------------------------
def reference_forward(tokens, params):
    emb = params["embedding"]
    embeds = jnp.take(emb, tokens, axis=0)               # (T, B, E)
    T, B, _ = embeds.shape
    H = params["w_hh"].shape[1]
    wih, whh = params["w_ih"], params["w_hh"]
    b = params["b_ih"] + params["b_hh"]

    def step(carry, x_t):
        h, c = carry
        gates = x_t @ wih.T + h @ whh.T + b
        i = jax.nn.sigmoid(gates[:, 0 * H:1 * H])
        f = jax.nn.sigmoid(gates[:, 1 * H:2 * H])
        g = jnp.tanh(gates[:, 2 * H:3 * H])
        o = jax.nn.sigmoid(gates[:, 3 * H:4 * H])
        c = f * c + i * g
        h = o * jnp.tanh(c)
        return (h, c), h

    init = (jnp.zeros((B, H), jnp.float32), jnp.zeros((B, H), jnp.float32))
    _, hs = lax.scan(step, init, embeds)                 # (T, B, H)
    y1 = hs @ params["fc1_w"].T + params["fc1_b"]
    logits = y1 @ params["fc2_w"].T + params["fc2_b"]
    return jnp.transpose(logits, (0, 2, 1))


def init_params(key, vocab_size, num_oov_buckets, embedding_size, latent_size):
    """Deterministic synthetic parameters mirroring the module's __init__ shapes."""
    ext_vocab = vocab_size + 3 + num_oov_buckets
    E, H, V = embedding_size, latent_size, ext_vocab
    ks = jax.random.split(key, 9)

    def u(k, shape, fan):
        bound = 1.0 / jnp.sqrt(fan)
        return jax.random.uniform(k, shape, jnp.float32, -bound, bound)

    emb = jax.random.normal(ks[0], (V, E), jnp.float32) * 0.02
    emb = emb.at[0].set(0.0)                             # padding_idx=0
    params = {
        "embedding": emb,
        "w_ih": u(ks[1], (4 * H, E), H),                 # LSTM weight_ih_l0
        "w_hh": u(ks[2], (4 * H, H), H),                 # LSTM weight_hh_l0
        "b_ih": u(ks[3], (4 * H,), H),
        "b_hh": u(ks[4], (4 * H,), H),
        "fc1_w": u(ks[5], (E, H), H),                    # Linear(latent, emb)
        "fc1_b": u(ks[6], (E,), H),
        "fc2_w": u(ks[7], (V, E), E),                    # Linear(emb, ext_vocab)
        "fc2_b": u(ks[8], (V,), E),
    }
    return params, ext_vocab


if __name__ == "__main__":
    # Small shapes consistent with the 'stackoverflow' branch structure.
    T, B = 8, 2                  # seq_len, batch
    vocab_size = 96
    num_oov_buckets = 1          # -> extended vocab = 96 + 3 + 1 = 100
    embedding_size = 32
    latent_size = 64

    key = jax.random.PRNGKey(0)
    pkey, tkey = jax.random.split(key)
    params, ext_vocab = init_params(pkey, vocab_size, num_oov_buckets,
                                    embedding_size, latent_size)
    tokens = jax.random.randint(tkey, (T, B), 0, ext_vocab, dtype=jnp.int32)

    packed = pack_params(params)          # hoisted: runs once, not per forward call
    jax.block_until_ready(packed["w2_t"])

    fwd = jax.jit(stackoverflow_forward)
    out = fwd(tokens, packed)
    jax.block_until_ready(out)
    assert out.shape == (T, ext_vocab, B), out.shape
    assert out.dtype == jnp.float32

    ref = jax.jit(reference_forward)(tokens, params)
    jax.block_until_ready(ref)
    max_err = float(jnp.max(jnp.abs(out - ref)))
    assert max_err < 2e-3, f"max |pallas - ref| = {max_err}"
    print("KERNEL_OK")
</pallas_src>

<mosaic_0001>
module attributes {stable_mosaic.version = 11 : i64} {
  func.func @_fused_kernel(%arg0: i32, %arg1: memref<64x128xf32, #tpu.memory_space<vmem>>, %arg2: memref<128x512xf32, #tpu.memory_space<vmem>>, %arg3: memref<128x512xf32, #tpu.memory_space<vmem>>, %arg4: memref<1x512xf32, #tpu.memory_space<vmem>>, %arg5: memref<128x128xf32, #tpu.memory_space<vmem>>, %arg6: memref<1x128xf32, #tpu.memory_space<vmem>>, %arg7: memref<128x128xf32, #tpu.memory_space<vmem>>, %arg8: memref<1x128xf32, #tpu.memory_space<vmem>>, %arg9: memref<64x128xf32, #tpu.memory_space<vmem>>, %arg10: memref<64x512xf32, #tpu.memory_space<vmem>>, %arg11: memref<64x128xf32, #tpu.memory_space<vmem>>) attributes {dimension_semantics = [#tpu.dimension_semantics<arbitrary>], iteration_bounds = array<i64: 1>, scalar_prefetch = 0 : i64, scratch_operands = 2 : i64, tpu.core_type = #tpu.core_type<tc>, window_params = [{pipeline_mode = #tpu.pipeline_mode<synchronous>, transform_indices = @transform_0, window_bounds = array<i64: 64, 128>}, {pipeline_mode = #tpu.pipeline_mode<synchronous>, transform_indices = @transform_1, window_bounds = array<i64: 128, 512>}, {pipeline_mode = #tpu.pipeline_mode<synchronous>, transform_indices = @transform_2, window_bounds = array<i64: 128, 512>}, {pipeline_mode = #tpu.pipeline_mode<synchronous>, transform_indices = @transform_3, window_bounds = array<i64: 1, 512>}, {pipeline_mode = #tpu.pipeline_mode<synchronous>, transform_indices = @transform_4, window_bounds = array<i64: 128, 128>}, {pipeline_mode = #tpu.pipeline_mode<synchronous>, transform_indices = @transform_5, window_bounds = array<i64: 1, 128>}, {pipeline_mode = #tpu.pipeline_mode<synchronous>, transform_indices = @transform_6, window_bounds = array<i64: 128, 128>}, {pipeline_mode = #tpu.pipeline_mode<synchronous>, transform_indices = @transform_7, window_bounds = array<i64: 1, 128>}, {pipeline_mode = #tpu.pipeline_mode<synchronous>, transform_indices = @transform_8, window_bounds = array<i64: 64, 128>}]} {
    %c0 = arith.constant 0 : index
    %c0_0 = arith.constant 0 : index
    %0 = vector.load %arg1[%c0, %c0_0] : memref<64x128xf32, #tpu.memory_space<vmem>>, vector<64x128xf32>
    %c0_1 = arith.constant 0 : index
    %c0_2 = arith.constant 0 : index
    %1 = vector.load %arg2[%c0_1, %c0_2] : memref<128x512xf32, #tpu.memory_space<vmem>>, vector<128x512xf32>
    %cst = arith.constant dense<0.000000e+00> : vector<64x512xf32>
    %2 = tpu.matmul %0, %1, %cst {dimension_numbers = #tpu.dot_dimension_numbers<[1], [0], [0], [1], [0, 0, 1, 1], [], []>} : vector<64x128xf32>, vector<128x512xf32>, vector<64x512xf32> -> vector<64x512xf32>
    %c0_3 = arith.constant 0 : index
    %c0_4 = arith.constant 0 : index
    %3 = vector.load %arg4[%c0_3, %c0_4] : memref<1x512xf32, #tpu.memory_space<vmem>>, vector<1x512xf32>
    %4 = vector.broadcast %3 : vector<1x512xf32> to vector<64x512xf32>
    %5 = arith.addf %2, %4 : vector<64x512xf32>
    %c0_5 = arith.constant 0 : index
    %c0_6 = arith.constant 0 : index
    %6 = vector.load %arg10[%c0_5, %c0_6] : memref<64x512xf32, #tpu.memory_space<vmem>>, vector<64x512xf32>
    tpu.vector_store %arg10[%c0_5, %c0_6], %5 {strides = array<i32>} : memref<64x512xf32, #tpu.memory_space<vmem>>, vector<64x512xf32>,
    %c0_7 = arith.constant 0 : index
    %c0_8 = arith.constant 0 : index
    %7 = vector.load %arg3[%c0_7, %c0_8] : memref<128x512xf32, #tpu.memory_space<vmem>>, vector<128x512xf32>
    %cst_9 = arith.constant 0.000000e+00 : f32
    %8 = vector.broadcast %cst_9 : f32 to vector<8x128xf32>
    %c0_i32 = arith.constant 0 : i32
    %c8_i32 = arith.constant 8 : i32
    %9 = arith.muli %c0_i32, %c8_i32 : i32
    %10 = tpu.assume_multiple %9, 8 : i32
    %11 = arith.index_cast %10 : i32 to index
    %c0_10 = arith.constant 0 : index
    %12 = vector.load %arg10[%11, %c0_10] : memref<64x512xf32, #tpu.memory_space<vmem>>, vector<8x512xf32>
    %cst_11 = arith.constant dense<0.000000e+00> : vector<8x512xf32>
    %13 = tpu.matmul %8, %7, %cst_11 {dimension_numbers = #tpu.dot_dimension_numbers<[1], [0], [0], [1], [0, 0, 1, 1], [], []>} : vector<8x128xf32>, vector<128x512xf32>, vector<8x512xf32> -> vector<8x512xf32>
    %14 = arith.addf %12, %13 : vector<8x512xf32>
    %15 = vector.extract_strided_slice %14 {offsets = [0, 0], sizes = [8, 128], strides = [1, 1]} : vector<8x512xf32> to vector<8x128xf32>
    %16 = arith.negf %15 : vector<8x128xf32>
    %17 = math.exp %16 : vector<8x128xf32>
    %cst_12 = arith.constant 1.000000e+00 : f32
    %18 = vector.broadcast %cst_12 : f32 to vector<8x128xf32>
    %19 = arith.addf %18, %17 : vector<8x128xf32>
    %20 = arith.divf %18, %19 : vector<8x128xf32>
    %21 = vector.extract_strided_slice %14 {offsets = [0, 128], sizes = [8, 128], strides = [1, 1]} : vector<8x512xf32> to vector<8x128xf32>
    %22 = arith.negf %21 : vector<8x128xf32>
    %23 = math.exp %22 : vector<8x128xf32>
    %cst_13 = arith.constant 1.000000e+00 : f32
    %24 = vector.broadcast %cst_13 : f32 to vector<8x128xf32>
    %25 = arith.addf %24, %23 : vector<8x128xf32>
    %26 = arith.divf %24, %25 : vector<8x128xf32>
    %27 = vector.extract_strided_slice %14 {offsets = [0, 256], sizes = [8, 128], strides = [1, 1]} : vector<8x512xf32> to vector<8x128xf32>
    %28 = math.tanh %27 : vector<8x128xf32>
    %29 = vector.extract_strided_slice %14 {offsets = [0, 384], sizes = [8, 128], strides = [1, 1]} : vector<8x512xf32> to vector<8x128xf32>
    %30 = arith.negf %29 : vector<8x128xf32>
    %31 = math.exp %30 : vector<8x128xf32>
    %cst_14 = arith.constant 1.000000e+00 : f32
    %32 = vector.broadcast %cst_14 : f32 to vector<8x128xf32>
    %33 = arith.addf %32, %31 : vector<8x128xf32>
    %34 = arith.divf %32, %33 : vector<8x128xf32>
    %35 = arith.mulf %26, %8 : vector<8x128xf32>
    %36 = arith.mulf %20, %28 : vector<8x128xf32>
    %37 = arith.addf %35, %36 : vector<8x128xf32>
    %38 = math.tanh %37 : vector<8x128xf32>
    %39 = arith.mulf %34, %38 : vector<8x128xf32>
    %40 = arith.index_cast %10 : i32 to index
    %c0_15 = arith.constant 0 : index
    %41 = vector.load %arg11[%40, %c0_15] : memref<64x128xf32, #tpu.memory_space<vmem>>, vector<8x128xf32>
    tpu.vector_store %arg11[%40, %c0_15], %39 {strides = array<i32>} : memref<64x128xf32, #tpu.memory_space<vmem>>, vector<8x128xf32>,
    %c1_i32 = arith.constant 1 : i32
    %c8_i32_16 = arith.constant 8 : i32
    %42 = arith.muli %c1_i32, %c8_i32_16 : i32
    %43 = tpu.assume_multiple %42, 8 : i32
    %44 = arith.index_cast %43 : i32 to index
    %c0_17 = arith.constant 0 : index
    %45 = vector.load %arg10[%44, %c0_17] : memref<64x512xf32, #tpu.memory_space<vmem>>, vector<8x512xf32>
    %cst_18 = arith.constant dense<0.000000e+00> : vector<8x512xf32>
    %46 = tpu.matmul %39, %7, %cst_18 {dimension_numbers = #tpu.dot_dimension_numbers<[1], [0], [0], [1], [0, 0, 1, 1], [], []>} : vector<8x128xf32>, vector<128x512xf32>, vector<8x512xf32> -> vector<8x512xf32>
    %47 = arith.addf %45, %46 : vector<8x512xf32>
    %48 = vector.extract_strided_slice %47 {offsets = [0, 0], sizes = [8, 128], strides = [1, 1]} : vector<8x512xf32> to vector<8x128xf32>
    %49 = arith.negf %48 : vector<8x128xf32>
    %50 = math.exp %49 : vector<8x128xf32>
    %cst_19 = arith.constant 1.000000e+00 : f32
    %51 = vector.broadcast %cst_19 : f32 to vector<8x128xf32>
    %52 = arith.addf %51, %50 : vector<8x128xf32>
    %53 = arith.divf %51, %52 : vector<8x128xf32>
    %54 = vector.extract_strided_slice %47 {offsets = [0, 128], sizes = [8, 128], strides = [1, 1]} : vector<8x512xf32> to vector<8x128xf32>
    %55 = arith.negf %54 : vector<8x128xf32>
    %56 = math.exp %55 : vector<8x128xf32>
    %cst_20 = arith.constant 1.000000e+00 : f32
    %57 = vector.broadcast %cst_20 : f32 to vector<8x128xf32>
    %58 = arith.addf %57, %56 : vector<8x128xf32>
    %59 = arith.divf %57, %58 : vector<8x128xf32>
    %60 = vector.extract_strided_slice %47 {offsets = [0, 256], sizes = [8, 128], strides = [1, 1]} : vector<8x512xf32> to vector<8x128xf32>
    %61 = math.tanh %60 : vector<8x128xf32>
    %62 = vector.extract_strided_slice %47 {offsets = [0, 384], sizes = [8, 128], strides = [1, 1]} : vector<8x512xf32> to vector<8x128xf32>
    %63 = arith.negf %62 : vector<8x128xf32>
    %64 = math.exp %63 : vector<8x128xf32>
    %cst_21 = arith.constant 1.000000e+00 : f32
    %65 = vector.broadcast %cst_21 : f32 to vector<8x128xf32>
    %66 = arith.addf %65, %64 : vector<8x128xf32>
    %67 = arith.divf %65, %66 : vector<8x128xf32>
    %68 = arith.mulf %59, %37 : vector<8x128xf32>
    %69 = arith.mulf %53, %61 : vector<8x128xf32>
    %70 = arith.addf %68, %69 : vector<8x128xf32>
    %71 = math.tanh %70 : vector<8x128xf32>
    %72 = arith.mulf %67, %71 : vector<8x128xf32>
    %73 = arith.index_cast %43 : i32 to index
    %c0_22 = arith.constant 0 : index
    %74 = vector.load %arg11[%73, %c0_22] : memref<64x128xf32, #tpu.memory_space<vmem>>, vector<8x128xf32>
    tpu.vector_store %arg11[%73, %c0_22], %72 {strides = array<i32>} : memref<64x128xf32, #tpu.memory_space<vmem>>, vector<8x128xf32>,
    %c2_i32 = arith.constant 2 : i32
    %c8_i32_23 = arith.constant 8 : i32
    %75 = arith.muli %c2_i32, %c8_i32_23 : i32
    %76 = tpu.assume_multiple %75, 8 : i32
    %77 = arith.index_cast %76 : i32 to index
    %c0_24 = arith.constant 0 : index
    %78 = vector.load %arg10[%77, %c0_24] : memref<64x512xf32, #tpu.memory_space<vmem>>, vector<8x512xf32>
    %cst_25 = arith.constant dense<0.000000e+00> : vector<8x512xf32>
    %79 = tpu.matmul %72, %7, %cst_25 {dimension_numbers = #tpu.dot_dimension_numbers<[1], [0], [0], [1], [0, 0, 1, 1], [], []>} : vector<8x128xf32>, vector<128x512xf32>, vector<8x512xf32> -> vector<8x512xf32>
    %80 = arith.addf %78, %79 : vector<8x512xf32>
    %81 = vector.extract_strided_slice %80 {offsets = [0, 0], sizes = [8, 128], strides = [1, 1]} : vector<8x512xf32> to vector<8x128xf32>
    %82 = arith.negf %81 : vector<8x128xf32>
    %83 = math.exp %82 : vector<8x128xf32>
    %cst_26 = arith.constant 1.000000e+00 : f32
    %84 = vector.broadcast %cst_26 : f32 to vector<8x128xf32>
    %85 = arith.addf %84, %83 : vector<8x128xf32>
    %86 = arith.divf %84, %85 : vector<8x128xf32>
    %87 = vector.extract_strided_slice %80 {offsets = [0, 128], sizes = [8, 128], strides = [1, 1]} : vector<8x512xf32> to vector<8x128xf32>
    %88 = arith.negf %87 : vector<8x128xf32>
    %89 = math.exp %88 : vector<8x128xf32>
    %cst_27 = arith.constant 1.000000e+00 : f32
    %90 = vector.broadcast %cst_27 : f32 to vector<8x128xf32>
    %91 = arith.addf %90, %89 : vector<8x128xf32>
    %92 = arith.divf %90, %91 : vector<8x128xf32>
    %93 = vector.extract_strided_slice %80 {offsets = [0, 256], sizes = [8, 128], strides = [1, 1]} : vector<8x512xf32> to vector<8x128xf32>
    %94 = math.tanh %93 : vector<8x128xf32>
    %95 = vector.extract_strided_slice %80 {offsets = [0, 384], sizes = [8, 128], strides = [1, 1]} : vector<8x512xf32> to vector<8x128xf32>
    %96 = arith.negf %95 : vector<8x128xf32>
    %97 = math.exp %96 : vector<8x128xf32>
    %cst_28 = arith.constant 1.000000e+00 : f32
    %98 = vector.broadcast %cst_28 : f32 to vector<8x128xf32>
    %99 = arith.addf %98, %97 : vector<8x128xf32>
    %100 = arith.divf %98, %99 : vector<8x128xf32>
    %101 = arith.mulf %92, %70 : vector<8x128xf32>
    %102 = arith.mulf %86, %94 : vector<8x128xf32>
    %103 = arith.addf %101, %102 : vector<8x128xf32>
    %104 = math.tanh %103 : vector<8x128xf32>
    %105 = arith.mulf %100, %104 : vector<8x128xf32>
    %106 = arith.index_cast %76 : i32 to index
    %c0_29 = arith.constant 0 : index
    %107 = vector.load %arg11[%106, %c0_29] : memref<64x128xf32, #tpu.memory_space<vmem>>, vector<8x128xf32>
    tpu.vector_store %arg11[%106, %c0_29], %105 {strides = array<i32>} : memref<64x128xf32, #tpu.memory_space<vmem>>, vector<8x128xf32>,
    %c3_i32 = arith.constant 3 : i32
    %c8_i32_30 = arith.constant 8 : i32
    %108 = arith.muli %c3_i32, %c8_i32_30 : i32
    %109 = tpu.assume_multiple %108, 8 : i32
    %110 = arith.index_cast %109 : i32 to index
    %c0_31 = arith.constant 0 : index
    %111 = vector.load %arg10[%110, %c0_31] : memref<64x512xf32, #tpu.memory_space<vmem>>, vector<8x512xf32>
    %cst_32 = arith.constant dense<0.000000e+00> : vector<8x512xf32>
    %112 = tpu.matmul %105, %7, %cst_32 {dimension_numbers = #tpu.dot_dimension_numbers<[1], [0], [0], [1], [0, 0, 1, 1], [], []>} : vector<8x128xf32>, vector<128x512xf32>, vector<8x512xf32> -> vector<8x512xf32>
    %113 = arith.addf %111, %112 : vector<8x512xf32>
    %114 = vector.extract_strided_slice %113 {offsets = [0, 0], sizes = [8, 128], strides = [1, 1]} : vector<8x512xf32> to vector<8x128xf32>
    %115 = arith.negf %114 : vector<8x128xf32>
    %116 = math.exp %115 : vector<8x128xf32>
    %cst_33 = arith.constant 1.000000e+00 : f32
    %117 = vector.broadcast %cst_33 : f32 to vector<8x128xf32>
    %118 = arith.addf %117, %116 : vector<8x128xf32>
    %119 = arith.divf %117, %118 : vector<8x128xf32>
    %120 = vector.extract_strided_slice %113 {offsets = [0, 128], sizes = [8, 128], strides = [1, 1]} : vector<8x512xf32> to vector<8x128xf32>
    %121 = arith.negf %120 : vector<8x128xf32>
    %122 = math.exp %121 : vector<8x128xf32>
    %cst_34 = arith.constant 1.000000e+00 : f32
    %123 = vector.broadcast %cst_34 : f32 to vector<8x128xf32>
    %124 = arith.addf %123, %122 : vector<8x128xf32>
    %125 = arith.divf %123, %124 : vector<8x128xf32>
    %126 = vector.extract_strided_slice %113 {offsets = [0, 256], sizes = [8, 128], strides = [1, 1]} : vector<8x512xf32> to vector<8x128xf32>
    %127 = math.tanh %126 : vector<8x128xf32>
    %128 = vector.extract_strided_slice %113 {offsets = [0, 384], sizes = [8, 128], strides = [1, 1]} : vector<8x512xf32> to vector<8x128xf32>
    %129 = arith.negf %128 : vector<8x128xf32>
    %130 = math.exp %129 : vector<8x128xf32>
    %cst_35 = arith.constant 1.000000e+00 : f32
    %131 = vector.broadcast %cst_35 : f32 to vector<8x128xf32>
    %132 = arith.addf %131, %130 : vector<8x128xf32>
    %133 = arith.divf %131, %132 : vector<8x128xf32>
    %134 = arith.mulf %125, %103 : vector<8x128xf32>
    %135 = arith.mulf %119, %127 : vector<8x128xf32>
    %136 = arith.addf %134, %135 : vector<8x128xf32>
    %137 = math.tanh %136 : vector<8x128xf32>
    %138 = arith.mulf %133, %137 : vector<8x128xf32>
    %139 = arith.index_cast %109 : i32 to index
    %c0_36 = arith.constant 0 : index
    %140 = vector.load %arg11[%139, %c0_36] : memref<64x128xf32, #tpu.memory_space<vmem>>, vector<8x128xf32>
    tpu.vector_store %arg11[%139, %c0_36], %138 {strides = array<i32>} : memref<64x128xf32, #tpu.memory_space<vmem>>, vector<8x128xf32>,
    %c4_i32 = arith.constant 4 : i32
    %c8_i32_37 = arith.constant 8 : i32
    %141 = arith.muli %c4_i32, %c8_i32_37 : i32
    %142 = tpu.assume_multiple %141, 8 : i32
    %143 = arith.index_cast %142 : i32 to index
    %c0_38 = arith.constant 0 : index
    %144 = vector.load %arg10[%143, %c0_38] : memref<64x512xf32, #tpu.memory_space<vmem>>, vector<8x512xf32>
    %cst_39 = arith.constant dense<0.000000e+00> : vector<8x512xf32>
    %145 = tpu.matmul %138, %7, %cst_39 {dimension_numbers = #tpu.dot_dimension_numbers<[1], [0], [0], [1], [0, 0, 1, 1], [], []>} : vector<8x128xf32>, vector<128x512xf32>, vector<8x512xf32> -> vector<8x512xf32>
    %146 = arith.addf %144, %145 : vector<8x512xf32>
    %147 = vector.extract_strided_slice %146 {offsets = [0, 0], sizes = [8, 128], strides = [1, 1]} : vector<8x512xf32> to vector<8x128xf32>
    %148 = arith.negf %147 : vector<8x128xf32>
    %149 = math.exp %148 : vector<8x128xf32>
    %cst_40 = arith.constant 1.000000e+00 : f32
    %150 = vector.broadcast %cst_40 : f32 to vector<8x128xf32>
    %151 = arith.addf %150, %149 : vector<8x128xf32>
    %152 = arith.divf %150, %151 : vector<8x128xf32>
    %153 = vector.extract_strided_slice %146 {offsets = [0, 128], sizes = [8, 128], strides = [1, 1]} : vector<8x512xf32> to vector<8x128xf32>
    %154 = arith.negf %153 : vector<8x128xf32>
    %155 = math.exp %154 : vector<8x128xf32>
    %cst_41 = arith.constant 1.000000e+00 : f32
    %156 = vector.broadcast %cst_41 : f32 to vector<8x128xf32>
    %157 = arith.addf %156, %155 : vector<8x128xf32>
    %158 = arith.divf %156, %157 : vector<8x128xf32>
    %159 = vector.extract_strided_slice %146 {offsets = [0, 256], sizes = [8, 128], strides = [1, 1]} : vector<8x512xf32> to vector<8x128xf32>
    %160 = math.tanh %159 : vector<8x128xf32>
    %161 = vector.extract_strided_slice %146 {offsets = [0, 384], sizes = [8, 128], strides = [1, 1]} : vector<8x512xf32> to vector<8x128xf32>
    %162 = arith.negf %161 : vector<8x128xf32>
    %163 = math.exp %162 : vector<8x128xf32>
    %cst_42 = arith.constant 1.000000e+00 : f32
    %164 = vector.broadcast %cst_42 : f32 to vector<8x128xf32>
    %165 = arith.addf %164, %163 : vector<8x128xf32>
    %166 = arith.divf %164, %165 : vector<8x128xf32>
    %167 = arith.mulf %158, %136 : vector<8x128xf32>
    %168 = arith.mulf %152, %160 : vector<8x128xf32>
    %169 = arith.addf %167, %168 : vector<8x128xf32>
    %170 = math.tanh %169 : vector<8x128xf32>
    %171 = arith.mulf %166, %170 : vector<8x128xf32>
    %172 = arith.index_cast %142 : i32 to index
    %c0_43 = arith.constant 0 : index
    %173 = vector.load %arg11[%172, %c0_43] : memref<64x128xf32, #tpu.memory_space<vmem>>, vector<8x128xf32>
    tpu.vector_store %arg11[%172, %c0_43], %171 {strides = array<i32>} : memref<64x128xf32, #tpu.memory_space<vmem>>, vector<8x128xf32>,
    %c5_i32 = arith.constant 5 : i32
    %c8_i32_44 = arith.constant 8 : i32
    %174 = arith.muli %c5_i32, %c8_i32_44 : i32
    %175 = tpu.assume_multiple %174, 8 : i32
    %176 = arith.index_cast %175 : i32 to index
    %c0_45 = arith.constant 0 : index
    %177 = vector.load %arg10[%176, %c0_45] : memref<64x512xf32, #tpu.memory_space<vmem>>, vector<8x512xf32>
    %cst_46 = arith.constant dense<0.000000e+00> : vector<8x512xf32>
    %178 = tpu.matmul %171, %7, %cst_46 {dimension_numbers = #tpu.dot_dimension_numbers<[1], [0], [0], [1], [0, 0, 1, 1], [], []>} : vector<8x128xf32>, vector<128x512xf32>, vector<8x512xf32> -> vector<8x512xf32>
    %179 = arith.addf %177, %178 : vector<8x512xf32>
    %180 = vector.extract_strided_slice %179 {offsets = [0, 0], sizes = [8, 128], strides = [1, 1]} : vector<8x512xf32> to vector<8x128xf32>
    %181 = arith.negf %180 : vector<8x128xf32>
    %182 = math.exp %181 : vector<8x128xf32>
    %cst_47 = arith.constant 1.000000e+00 : f32
    %183 = vector.broadcast %cst_47 : f32 to vector<8x128xf32>
    %184 = arith.addf %183, %182 : vector<8x128xf32>
    %185 = arith.divf %183, %184 : vector<8x128xf32>
    %186 = vector.extract_strided_slice %179 {offsets = [0, 128], sizes = [8, 128], strides = [1, 1]} : vector<8x512xf32> to vector<8x128xf32>
    %187 = arith.negf %186 : vector<8x128xf32>
    %188 = math.exp %187 : vector<8x128xf32>
    %cst_48 = arith.constant 1.000000e+00 : f32
    %189 = vector.broadcast %cst_48 : f32 to vector<8x128xf32>
    %190 = arith.addf %189, %188 : vector<8x128xf32>
    %191 = arith.divf %189, %190 : vector<8x128xf32>
    %192 = vector.extract_strided_slice %179 {offsets = [0, 256], sizes = [8, 128], strides = [1, 1]} : vector<8x512xf32> to vector<8x128xf32>
    %193 = math.tanh %192 : vector<8x128xf32>
    %194 = vector.extract_strided_slice %179 {offsets = [0, 384], sizes = [8, 128], strides = [1, 1]} : vector<8x512xf32> to vector<8x128xf32>
    %195 = arith.negf %194 : vector<8x128xf32>
    %196 = math.exp %195 : vector<8x128xf32>
    %cst_49 = arith.constant 1.000000e+00 : f32
    %197 = vector.broadcast %cst_49 : f32 to vector<8x128xf32>
    %198 = arith.addf %197, %196 : vector<8x128xf32>
    %199 = arith.divf %197, %198 : vector<8x128xf32>
    %200 = arith.mulf %191, %169 : vector<8x128xf32>
    %201 = arith.mulf %185, %193 : vector<8x128xf32>
    %202 = arith.addf %200, %201 : vector<8x128xf32>
    %203 = math.tanh %202 : vector<8x128xf32>
    %204 = arith.mulf %199, %203 : vector<8x128xf32>
    %205 = arith.index_cast %175 : i32 to index
    %c0_50 = arith.constant 0 : index
    %206 = vector.load %arg11[%205, %c0_50] : memref<64x128xf32, #tpu.memory_space<vmem>>, vector<8x128xf32>
    tpu.vector_store %arg11[%205, %c0_50], %204 {strides = array<i32>} : memref<64x128xf32, #tpu.memory_space<vmem>>, vector<8x128xf32>,
    %c6_i32 = arith.constant 6 : i32
    %c8_i32_51 = arith.constant 8 : i32
    %207 = arith.muli %c6_i32, %c8_i32_51 : i32
    %208 = tpu.assume_multiple %207, 8 : i32
    %209 = arith.index_cast %208 : i32 to index
    %c0_52 = arith.constant 0 : index
    %210 = vector.load %arg10[%209, %c0_52] : memref<64x512xf32, #tpu.memory_space<vmem>>, vector<8x512xf32>
    %cst_53 = arith.constant dense<0.000000e+00> : vector<8x512xf32>
    %211 = tpu.matmul %204, %7, %cst_53 {dimension_numbers = #tpu.dot_dimension_numbers<[1], [0], [0], [1], [0, 0, 1, 1], [], []>} : vector<8x128xf32>, vector<128x512xf32>, vector<8x512xf32> -> vector<8x512xf32>
    %212 = arith.addf %210, %211 : vector<8x512xf32>
    %213 = vector.extract_strided_slice %212 {offsets = [0, 0], sizes = [8, 128], strides = [1, 1]} : vector<8x512xf32> to vector<8x128xf32>
    %214 = arith.negf %213 : vector<8x128xf32>
    %215 = math.exp %214 : vector<8x128xf32>
    %cst_54 = arith.constant 1.000000e+00 : f32
    %216 = vector.broadcast %cst_54 : f32 to vector<8x128xf32>
    %217 = arith.addf %216, %215 : vector<8x128xf32>
    %218 = arith.divf %216, %217 : vector<8x128xf32>
    %219 = vector.extract_strided_slice %212 {offsets = [0, 128], sizes = [8, 128], strides = [1, 1]} : vector<8x512xf32> to vector<8x128xf32>
    %220 = arith.negf %219 : vector<8x128xf32>
    %221 = math.exp %220 : vector<8x128xf32>
    %cst_55 = arith.constant 1.000000e+00 : f32
    %222 = vector.broadcast %cst_55 : f32 to vector<8x128xf32>
    %223 = arith.addf %222, %221 : vector<8x128xf32>
    %224 = arith.divf %222, %223 : vector<8x128xf32>
    %225 = vector.extract_strided_slice %212 {offsets = [0, 256], sizes = [8, 128], strides = [1, 1]} : vector<8x512xf32> to vector<8x128xf32>
    %226 = math.tanh %225 : vector<8x128xf32>
    %227 = vector.extract_strided_slice %212 {offsets = [0, 384], sizes = [8, 128], strides = [1, 1]} : vector<8x512xf32> to vector<8x128xf32>
    %228 = arith.negf %227 : vector<8x128xf32>
    %229 = math.exp %228 : vector<8x128xf32>
    %cst_56 = arith.constant 1.000000e+00 : f32
    %230 = vector.broadcast %cst_56 : f32 to vector<8x128xf32>
    %231 = arith.addf %230, %229 : vector<8x128xf32>
    %232 = arith.divf %230, %231 : vector<8x128xf32>
    %233 = arith.mulf %224, %202 : vector<8x128xf32>
    %234 = arith.mulf %218, %226 : vector<8x128xf32>
    %235 = arith.addf %233, %234 : vector<8x128xf32>
    %236 = math.tanh %235 : vector<8x128xf32>
    %237 = arith.mulf %232, %236 : vector<8x128xf32>
    %238 = arith.index_cast %208 : i32 to index
    %c0_57 = arith.constant 0 : index
    %239 = vector.load %arg11[%238, %c0_57] : memref<64x128xf32, #tpu.memory_space<vmem>>, vector<8x128xf32>
    tpu.vector_store %arg11[%238, %c0_57], %237 {strides = array<i32>} : memref<64x128xf32, #tpu.memory_space<vmem>>, vector<8x128xf32>,
    %c7_i32 = arith.constant 7 : i32
    %c8_i32_58 = arith.constant 8 : i32
    %240 = arith.muli %c7_i32, %c8_i32_58 : i32
    %241 = tpu.assume_multiple %240, 8 : i32
    %242 = arith.index_cast %241 : i32 to index
    %c0_59 = arith.constant 0 : index
    %243 = vector.load %arg10[%242, %c0_59] : memref<64x512xf32, #tpu.memory_space<vmem>>, vector<8x512xf32>
    %cst_60 = arith.constant dense<0.000000e+00> : vector<8x512xf32>
    %244 = tpu.matmul %237, %7, %cst_60 {dimension_numbers = #tpu.dot_dimension_numbers<[1], [0], [0], [1], [0, 0, 1, 1], [], []>} : vector<8x128xf32>, vector<128x512xf32>, vector<8x512xf32> -> vector<8x512xf32>
    %245 = arith.addf %243, %244 : vector<8x512xf32>
    %246 = vector.extract_strided_slice %245 {offsets = [0, 0], sizes = [8, 128], strides = [1, 1]} : vector<8x512xf32> to vector<8x128xf32>
    %247 = arith.negf %246 : vector<8x128xf32>
    %248 = math.exp %247 : vector<8x128xf32>
    %cst_61 = arith.constant 1.000000e+00 : f32
    %249 = vector.broadcast %cst_61 : f32 to vector<8x128xf32>
    %250 = arith.addf %249, %248 : vector<8x128xf32>
    %251 = arith.divf %249, %250 : vector<8x128xf32>
    %252 = vector.extract_strided_slice %245 {offsets = [0, 128], sizes = [8, 128], strides = [1, 1]} : vector<8x512xf32> to vector<8x128xf32>
    %253 = arith.negf %252 : vector<8x128xf32>
    %254 = math.exp %253 : vector<8x128xf32>
    %cst_62 = arith.constant 1.000000e+00 : f32
    %255 = vector.broadcast %cst_62 : f32 to vector<8x128xf32>
    %256 = arith.addf %255, %254 : vector<8x128xf32>
    %257 = arith.divf %255, %256 : vector<8x128xf32>
    %258 = vector.extract_strided_slice %245 {offsets = [0, 256], sizes = [8, 128], strides = [1, 1]} : vector<8x512xf32> to vector<8x128xf32>
    %259 = math.tanh %258 : vector<8x128xf32>
    %260 = vector.extract_strided_slice %245 {offsets = [0, 384], sizes = [8, 128], strides = [1, 1]} : vector<8x512xf32> to vector<8x128xf32>
    %261 = arith.negf %260 : vector<8x128xf32>
    %262 = math.exp %261 : vector<8x128xf32>
    %cst_63 = arith.constant 1.000000e+00 : f32
    %263 = vector.broadcast %cst_63 : f32 to vector<8x128xf32>
    %264 = arith.addf %263, %262 : vector<8x128xf32>
    %265 = arith.divf %263, %264 : vector<8x128xf32>
    %266 = arith.mulf %257, %235 : vector<8x128xf32>
    %267 = arith.mulf %251, %259 : vector<8x128xf32>
    %268 = arith.addf %266, %267 : vector<8x128xf32>
    %269 = math.tanh %268 : vector<8x128xf32>
    %270 = arith.mulf %265, %269 : vector<8x128xf32>
    %271 = arith.index_cast %241 : i32 to index
    %c0_64 = arith.constant 0 : index
    %272 = vector.load %arg11[%271, %c0_64] : memref<64x128xf32, #tpu.memory_space<vmem>>, vector<8x128xf32>
    tpu.vector_store %arg11[%271, %c0_64], %270 {strides = array<i32>} : memref<64x128xf32, #tpu.memory_space<vmem>>, vector<8x128xf32>,
    %c8_i32_65 = arith.constant 8 : i32
    %c0_66 = arith.constant 0 : index
    %c0_67 = arith.constant 0 : index
    %273 = vector.load %arg11[%c0_66, %c0_67] : memref<64x128xf32, #tpu.memory_space<vmem>>, vector<64x128xf32>
    %c0_68 = arith.constant 0 : index
    %c0_69 = arith.constant 0 : index
    %274 = vector.load %arg5[%c0_68, %c0_69] : memref<128x128xf32, #tpu.memory_space<vmem>>, vector<128x128xf32>
    %cst_70 = arith.constant dense<0.000000e+00> : vector<64x128xf32>
    %275 = tpu.matmul %273, %274, %cst_70 {dimension_numbers = #tpu.dot_dimension_numbers<[1], [0], [0], [1], [0, 0, 1, 1], [], []>} : vector<64x128xf32>, vector<128x128xf32>, vector<64x128xf32> -> vector<64x128xf32>
    %c0_71 = arith.constant 0 : index
    %c0_72 = arith.constant 0 : index
    %276 = vector.load %arg6[%c0_71, %c0_72] : memref<1x128xf32, #tpu.memory_space<vmem>>, vector<1x128xf32>
    %277 = vector.broadcast %276 : vector<1x128xf32> to vector<64x128xf32>
    %278 = arith.addf %275, %277 : vector<64x128xf32>
    %c0_73 = arith.constant 0 : index
    %c0_74 = arith.constant 0 : index
    %279 = vector.load %arg7[%c0_73, %c0_74] : memref<128x128xf32, #tpu.memory_space<vmem>>, vector<128x128xf32>
    %cst_75 = arith.constant dense<0.000000e+00> : vector<64x128xf32>
    %280 = tpu.matmul %278, %279, %cst_75 {dimension_numbers = #tpu.dot_dimension_numbers<[1], [0], [0], [1], [0, 0, 1, 1], [], []>} : vector<64x128xf32>, vector<128x128xf32>, vector<64x128xf32> -> vector<64x128xf32>
    %c0_76 = arith.constant 0 : index
    %c0_77 = arith.constant 0 : index
    %281 = vector.load %arg8[%c0_76, %c0_77] : memref<1x128xf32, #tpu.memory_space<vmem>>, vector<1x128xf32>
    %282 = vector.broadcast %281 : vector<1x128xf32> to vector<64x128xf32>
    %283 = arith.addf %280, %282 : vector<64x128xf32>
    %c0_78 = arith.constant 0 : index
    %c0_79 = arith.constant 0 : index
    %284 = vector.load %arg9[%c0_78, %c0_79] : memref<64x128xf32, #tpu.memory_space<vmem>>, vector<64x128xf32>
    tpu.vector_store %arg9[%c0_78, %c0_79], %283 {strides = array<i32>} : memref<64x128xf32, #tpu.memory_space<vmem>>, vector<64x128xf32>,
    return
  }
  func.func @transform_0(%arg0: i32) -> (i32, i32) {
    %c0_i32 = arith.constant 0 : i32
    %c0_i32_0 = arith.constant 0 : i32
    %c0_i32_1 = arith.constant 0 : i32
    return %c0_i32, %c0_i32_0 : i32, i32
  }
  func.func @transform_1(%arg0: i32) -> (i32, i32) {
    %c0_i32 = arith.constant 0 : i32
    %c0_i32_0 = arith.constant 0 : i32
    %c0_i32_1 = arith.constant 0 : i32
    return %c0_i32, %c0_i32_0 : i32, i32
  }
  func.func @transform_2(%arg0: i32) -> (i32, i32) {
    %c0_i32 = arith.constant 0 : i32
    %c0_i32_0 = arith.constant 0 : i32
    %c0_i32_1 = arith.constant 0 : i32
    return %c0_i32, %c0_i32_0 : i32, i32
  }
  func.func @transform_3(%arg0: i32) -> (i32, i32) {
    %c0_i32 = arith.constant 0 : i32
    %c0_i32_0 = arith.constant 0 : i32
    %c0_i32_1 = arith.constant 0 : i32
    return %c0_i32, %c0_i32_0 : i32, i32
  }
  func.func @transform_4(%arg0: i32) -> (i32, i32) {
    %c0_i32 = arith.constant 0 : i32
    %c0_i32_0 = arith.constant 0 : i32
    %c0_i32_1 = arith.constant 0 : i32
    return %c0_i32, %c0_i32_0 : i32, i32
  }
  func.func @transform_5(%arg0: i32) -> (i32, i32) {
    %c0_i32 = arith.constant 0 : i32
    %c0_i32_0 = arith.constant 0 : i32
    %c0_i32_1 = arith.constant 0 : i32
    return %c0_i32, %c0_i32_0 : i32, i32
  }
  func.func @transform_6(%arg0: i32) -> (i32, i32) {
    %c0_i32 = arith.constant 0 : i32
    %c0_i32_0 = arith.constant 0 : i32
    %c0_i32_1 = arith.constant 0 : i32
    return %c0_i32, %c0_i32_0 : i32, i32
  }
  func.func @transform_7(%arg0: i32) -> (i32, i32) {
    %c0_i32 = arith.constant 0 : i32
    %c0_i32_0 = arith.constant 0 : i32
    %c0_i32_1 = arith.constant 0 : i32
    return %c0_i32, %c0_i32_0 : i32, i32
  }
  func.func @transform_8(%arg0: i32) -> (i32, i32) {
    %c0_i32 = arith.constant 0 : i32
    %c0_i32_0 = arith.constant 0 : i32
    %c0_i32_1 = arith.constant 0 : i32
    return %c0_i32, %c0_i32_0 : i32, i32
  }
}

</mosaic_0001>

<llo_original>
// kernel: stackoverflow_forward.1
$region0: #{stackoverflow_forward.1}
  #allocation0 [shape = 'u32[]', space=smem, size = 0x4, offset = 0x4, fixed_abs, tag = 'smem constant byte address 0x4 - core index']
  #allocation1 [shape = 'u32[144,128]{1,0:T(1,128)}', space=vmem, size = 0x12000, scoped, tag = 'internal scratch']
  #allocation2 [shape = 'f32[64,512]{1,0:T(8,128)}', space=vmem, size = 0x20000, scoped, tag = 'scratch operand']
  #allocation3 [shape = 'f32[64,128]{1,0:T(8,128)}', space=vmem, size = 0x8000, scoped, tag = 'scratch operand']
  %s0 = inlined_call_operand.vmem [shape: f32[64,128], index: 0, kind: input, shape index: {}]
  %s1 = inlined_call_operand.vmem [shape: f32[128,512], index: 1, kind: input, shape index: {}]
  %s2 = inlined_call_operand.hbm [shape: f32[128,512], index: 2, kind: input, shape index: {}]
  %s3 = inlined_call_operand.vmem [shape: f32[1,512], index: 3, kind: input, shape index: {}]
  %s4 = inlined_call_operand.vmem [shape: f32[128,128], index: 4, kind: input, shape index: {}]
  %s5 = inlined_call_operand.vmem [shape: f32[1,128], index: 5, kind: input, shape index: {}]
  %s6 = inlined_call_operand.vmem [shape: f32[128,128], index: 6, kind: input, shape index: {}]
  %s7 = inlined_call_operand.vmem [shape: f32[1,128], index: 7, kind: input, shape index: {}]
  %s8 = inlined_call_operand.vmem [shape: f32[64,128], index: 8, kind: output, shape index: {}]
  %s9 = sld [smem:[#allocation0]]
  $region46: #{stackoverflow_forward.1} parent=0
    _
  %s11 = ssub.s32 1, %s9
  %s12 = scalar_select 0, %s11, %s9
  $region1: #{stackoverflow_forward.1} parent=0
    #allocation4 [shape = 'u8[262144]{0}', space=vmem, size = 0x40000, scoped, tag = 'input window, operand 2, single buffered']
    #allocation5 [shape = 's32[1]{0}', space=sflag, size = 0x4, scoped, tag = 'scoped memory for stackoverflow_forward.1']
    %13 = vsyncpa [#allocation5], 0
    // Predicated region
    $region2: #{stackoverflow_forward.1} parent=1 // pred_check
      _
    $region3: #{stackoverflow_forward.1} parent=1 // pred_check_branch
      %15 = sbr.rel (0) target = $region5
    $region4: #{stackoverflow_forward.1} parent=1 // pred_region
      _
    $region5: #{stackoverflow_forward.1} parent=1 // pred_fallthru
      _
    // Predicated region
    $region6: #{stackoverflow_forward.1} parent=1 // pred_check
      _
    $region7: #{stackoverflow_forward.1} parent=1 // pred_check_branch
      %17 = sbr.rel (0) target = $region9
    $region8: #{stackoverflow_forward.1} parent=1 // pred_region
      _
    $region9: #{stackoverflow_forward.1} parent=1 // pred_fallthru
      _
    // Predicated region
    $region10: #{stackoverflow_forward.1} parent=1 // pred_check
      _
    $region11: #{stackoverflow_forward.1} parent=1 // pred_check_branch
      %19 = sbr.rel (0) target = $region13
    $region12: #{stackoverflow_forward.1} parent=1 // pred_region
      %s21 = ssub.s32 8192, 8192
      %22 = vsyncadd [#allocation5], %s21
      %s23 = sshll.u32 [#allocation4], 4
      %s24 = int_to_ptr.vmem [resolvable:$true] %s23
      %29 = dma.hbm_to_vmem [thread:$0]  %s2, 8192, %s24, [#allocation5], 512, 512, 32
    $region13: #{stackoverflow_forward.1} parent=1 // pred_fallthru
      _
    // Predicated region
    $region14: #{stackoverflow_forward.1} parent=1 // pred_check
      _
    $region15: #{stackoverflow_forward.1} parent=1 // pred_check_branch
      %31 = sbr.rel (0) target = $region17
    $region16: #{stackoverflow_forward.1} parent=1 // pred_region
      _
    $region17: #{stackoverflow_forward.1} parent=1 // pred_fallthru
      _
    // Predicated region
    $region18: #{stackoverflow_forward.1} parent=1 // pred_check
      _
    $region19: #{stackoverflow_forward.1} parent=1 // pred_check_branch
      %33 = sbr.rel (0) target = $region21
    $region20: #{stackoverflow_forward.1} parent=1 // pred_region
      _
    $region21: #{stackoverflow_forward.1} parent=1 // pred_fallthru
      _
    // Predicated region
    $region22: #{stackoverflow_forward.1} parent=1 // pred_check
      _
    $region23: #{stackoverflow_forward.1} parent=1 // pred_check_branch
      %35 = sbr.rel (0) target = $region25
    $region24: #{stackoverflow_forward.1} parent=1 // pred_region
      _
    $region25: #{stackoverflow_forward.1} parent=1 // pred_fallthru
      _
    // Predicated region
    $region26: #{stackoverflow_forward.1} parent=1 // pred_check
      _
    $region27: #{stackoverflow_forward.1} parent=1 // pred_check_branch
      %37 = sbr.rel (0) target = $region29
    $region28: #{stackoverflow_forward.1} parent=1 // pred_region
      _
    $region29: #{stackoverflow_forward.1} parent=1 // pred_fallthru
      _
    // Predicated region
    $region30: #{stackoverflow_forward.1} parent=1 // pred_check
      _
    $region31: #{stackoverflow_forward.1} parent=1 // pred_check_branch
      %39 = sbr.rel (0) target = $region33
    $region32: #{stackoverflow_forward.1} parent=1 // pred_region
      _
    $region33: #{stackoverflow_forward.1} parent=1 // pred_fallthru
      _
    // Predicated region
    $region34: #{stackoverflow_forward.1} parent=1 // pred_check
      _
    $region35: #{stackoverflow_forward.1} parent=1 // pred_check_branch
      %41 = sbr.rel (0) target = $region37
    $region36: #{stackoverflow_forward.1} parent=1 // pred_region
      %42 = dma.done [#allocation5], 8192
    $region37: #{stackoverflow_forward.1} parent=1 // pred_fallthru
      _
    %v43 = vld [vmem:[%s0] sm:$0xff]
    %v44 = vld [vmem:[%s0 + $0x8] sm:$0xff]
    %v45 = vld [vmem:[%s0 + $0x10] sm:$0xff]
    %v46 = vld [vmem:[%s0 + $0x18] sm:$0xff]
    %v47 = vld [vmem:[%s0 + $0x20] sm:$0xff]
    %v48 = vld [vmem:[%s0 + $0x28] sm:$0xff]
    %v49 = vld [vmem:[%s0 + $0x30] sm:$0xff]
    %v50 = vld [vmem:[%s0 + $0x38] sm:$0xff]
    %v51 = vld [vmem:[%s1] sm:$0xff]
    %v52 = vld [vmem:[%s1 + $0x8] sm:$0xff]
    %v53 = vld [vmem:[%s1 + $0x10] sm:$0xff]
    %v54 = vld [vmem:[%s1 + $0x18] sm:$0xff]
    %v55 = vld [vmem:[%s1 + $0x20] sm:$0xff]
    %v56 = vld [vmem:[%s1 + $0x28] sm:$0xff]
    %v57 = vld [vmem:[%s1 + $0x30] sm:$0xff]
    %v58 = vld [vmem:[%s1 + $0x38] sm:$0xff]
    %v59 = vld [vmem:[%s1 + $0x40] sm:$0xff]
    %v60 = vld [vmem:[%s1 + $0x48] sm:$0xff]
    %v61 = vld [vmem:[%s1 + $0x50] sm:$0xff]
    %v62 = vld [vmem:[%s1 + $0x58] sm:$0xff]
    %v63 = vld [vmem:[%s1 + $0x60] sm:$0xff]
    %v64 = vld [vmem:[%s1 + $0x68] sm:$0xff]
    %v65 = vld [vmem:[%s1 + $0x70] sm:$0xff]
    %v66 = vld [vmem:[%s1 + $0x78] sm:$0xff]
    %v67 = vld [vmem:[%s1 + $0x80] sm:$0xff]
    %v68 = vld [vmem:[%s1 + $0x88] sm:$0xff]
    %v69 = vld [vmem:[%s1 + $0x90] sm:$0xff]
    %v70 = vld [vmem:[%s1 + $0x98] sm:$0xff]
    %v71 = vld [vmem:[%s1 + $0xa0] sm:$0xff]
    %v72 = vld [vmem:[%s1 + $0xa8] sm:$0xff]
    %v73 = vld [vmem:[%s1 + $0xb0] sm:$0xff]
    %v74 = vld [vmem:[%s1 + $0xb8] sm:$0xff]
    %v75 = vld [vmem:[%s1 + $0xc0] sm:$0xff]
    %v76 = vld [vmem:[%s1 + $0xc8] sm:$0xff]
    %v77 = vld [vmem:[%s1 + $0xd0] sm:$0xff]
    %v78 = vld [vmem:[%s1 + $0xd8] sm:$0xff]
    %v79 = vld [vmem:[%s1 + $0xe0] sm:$0xff]
    %v80 = vld [vmem:[%s1 + $0xe8] sm:$0xff]
    %v81 = vld [vmem:[%s1 + $0xf0] sm:$0xff]
    %v82 = vld [vmem:[%s1 + $0xf8] sm:$0xff]
    %v83 = vld [vmem:[%s1 + $0x100] sm:$0xff]
    %v84 = vld [vmem:[%s1 + $0x108] sm:$0xff]
    %v85 = vld [vmem:[%s1 + $0x110] sm:$0xff]
    %v86 = vld [vmem:[%s1 + $0x118] sm:$0xff]
    %v87 = vld [vmem:[%s1 + $0x120] sm:$0xff]
    %v88 = vld [vmem:[%s1 + $0x128] sm:$0xff]
    %v89 = vld [vmem:[%s1 + $0x130] sm:$0xff]
    %v90 = vld [vmem:[%s1 + $0x138] sm:$0xff]
    %v91 = vld [vmem:[%s1 + $0x140] sm:$0xff]
    %v92 = vld [vmem:[%s1 + $0x148] sm:$0xff]
    %v93 = vld [vmem:[%s1 + $0x150] sm:$0xff]
    %v94 = vld [vmem:[%s1 + $0x158] sm:$0xff]
    %v95 = vld [vmem:[%s1 + $0x160] sm:$0xff]
    %v96 = vld [vmem:[%s1 + $0x168] sm:$0xff]
    %v97 = vld [vmem:[%s1 + $0x170] sm:$0xff]
    %v98 = vld [vmem:[%s1 + $0x178] sm:$0xff]
    %v99 = vld [vmem:[%s1 + $0x180] sm:$0xff]
    %v100 = vld [vmem:[%s1 + $0x188] sm:$0xff]
    %v101 = vld [vmem:[%s1 + $0x190] sm:$0xff]
    %v102 = vld [vmem:[%s1 + $0x198] sm:$0xff]
    %v103 = vld [vmem:[%s1 + $0x1a0] sm:$0xff]
    %v104 = vld [vmem:[%s1 + $0x1a8] sm:$0xff]
    %v105 = vld [vmem:[%s1 + $0x1b0] sm:$0xff]
    %v106 = vld [vmem:[%s1 + $0x1b8] sm:$0xff]
    %v107 = vld [vmem:[%s1 + $0x1c0] sm:$0xff]
    %v108 = vld [vmem:[%s1 + $0x1c8] sm:$0xff]
    %v109 = vld [vmem:[%s1 + $0x1d0] sm:$0xff]
    %v110 = vld [vmem:[%s1 + $0x1d8] sm:$0xff]
    %v111 = vld [vmem:[%s1 + $0x1e0] sm:$0xff]
    %v112 = vld [vmem:[%s1 + $0x1e8] sm:$0xff]
    %v113 = vld [vmem:[%s1 + $0x1f0] sm:$0xff]
    %v114 = vld [vmem:[%s1 + $0x1f8] sm:$0xff]
    %v115 = vld [vmem:[%s3] sm:$0xf]
    %v117 = vlaneseq
    %v118 = vshrl.u32 %v117, 7
    %v119 = vsub.s32 0, %v118
    %v120 = vrot.slane %v115, %v119
    %v121 = vlaneseq
    %v122 = vshrl.u32 %v121, 7
    %v123 = vsub.s32 1, %v122
    %v124 = vrot.slane %v115, %v123
    %v125 = vlaneseq
    %v126 = vshrl.u32 %v125, 7
    %v127 = vsub.s32 2, %v126
    %v128 = vrot.slane %v115, %v127
    %v129 = vlaneseq
    %v130 = vshrl.u32 %v129, 7
    %v131 = vsub.s32 3, %v130
    %v132 = vrot.slane %v115, %v131
    %137 = vmatprep.subr.mxu0 %v112
    %138 = vmatpush1.msra.mxu0 %v111
    %139 = vmatprep.subr.mxu0 %v108
    %140 = vmatpush1.msra.mxu0 %v107
    %141 = vmatprep.subr.mxu0 %v104
    %142 = vmatpush1.msra.mxu0 %v103
    %143 = vmatprep.subr.mxu0 %v100
    %144 = vmatpush1.msra.mxu0 %v99
    %145 = vmatprep.subr.mxu0 %v96
    %146 = vmatpush1.msra.mxu0 %v95
    %147 = vmatprep.subr.mxu0 %v92
    %148 = vmatpush1.msra.mxu0 %v91
    %149 = vmatprep.subr.mxu0 %v88
    %150 = vmatpush1.msra.mxu0 %v87
    %151 = vmatprep.subr.mxu0 %v84
    %152 = vmatpush1.msra.mxu0 %v83
    %153 = vmatprep.subr.mxu0 %v80
    %154 = vmatpush1.msra.mxu0 %v79
    %155 = vmatprep.subr.mxu0 %v76
    %156 = vmatpush1.msra.mxu0 %v75
    %157 = vmatprep.subr.mxu0 %v72
    %158 = vmatpush1.msra.mxu0 %v71
    %159 = vmatprep.subr.mxu0 %v68
    %160 = vmatpush1.msra.mxu0 %v67
    %161 = vmatprep.subr.mxu0 %v64
    %162 = vmatpush1.msra.mxu0 %v63
    %163 = vmatprep.subr.mxu0 %v60
    %164 = vmatpush1.msra.mxu0 %v59
    %165 = vmatprep.subr.mxu0 %v56
    %166 = vmatpush1.msra.mxu0 %v55
    %167 = vmatprep.subr.mxu0 %v52
    %168 = vmatpush1.msra.mxu0 %v51
    %169 = vmatprep.subr.mxu0 0.0
    %170 = vmatpush2.msra.mxu0 0.0
    %171 = vmatprep.subr.mxu0 0.0
    %172 = vmatpush2.msra.mxu0 0.0
    %173 = vmatprep.subr.mxu0 0.0
    %174 = vmatpush2.msra.mxu0 0.0
    %175 = vmatprep.subr.mxu0 0.0
    %176 = vmatpush2.msra.mxu0 0.0
    %177 = vmatprep.subr.mxu0 0.0
    %178 = vmatpush2.msra.mxu0 0.0
    %179 = vmatprep.subr.mxu0 0.0
    %180 = vmatpush2.msra.mxu0 0.0
    %181 = vmatprep.subr.mxu0 0.0
    %182 = vmatpush2.msra.mxu0 0.0
    %183 = vmatprep.subr.mxu0 0.0
    %184 = vmatpush2.msra.mxu0 0.0
    %185 = vmatprep.subr.mxu0 0.0
    %186 = vmatpush2.msra.mxu0 0.0
    %187 = vmatprep.subr.mxu0 0.0
    %188 = vmatpush2.msra.mxu0 0.0
    %189 = vmatprep.subr.mxu0 0.0
    %190 = vmatpush2.msra.mxu0 0.0
    %191 = vmatprep.subr.mxu0 0.0
    %192 = vmatpush2.msra.mxu0 0.0
    %193 = vmatprep.subr.mxu0 0.0
    %194 = vmatpush2.msra.mxu0 0.0
    %195 = vmatprep.subr.mxu0 0.0
    %196 = vmatpush2.msra.mxu0 0.0
    %197 = vmatprep.subr.mxu0 0.0
    %198 = vmatpush2.msra.mxu0 0.0
    %199 = vmatprep.subr.mxu0 0.0
    %200 = vmatpush2.msra.mxu0 0.0
    %201 = vmatprep.mubr.f32.mxu0 0.0
    %202 = vmatmul.mubr.f32.gmra.mxu0 %v43
    %v203 = vpop.f32.mrf.mxu0
    %v204 = vadd.f32 %v120, %v203
    %v205 = vpop.f32.mrf.mxu0
    %v206 = vadd.f32 %v124, %v205
    %207 = vmatprep.mubr.f32.mxu0 0.0
    %208 = vmatmul.mubr.f32.gmra.mxu0 %v44
    %v209 = vpop.f32.mrf.mxu0
    %v210 = vadd.f32 %v120, %v209
    %v211 = vpop.f32.mrf.mxu0
    %v212 = vadd.f32 %v124, %v211
    %213 = vmatprep.mubr.f32.mxu0 0.0
    %214 = vmatmul.mubr.f32.gmra.mxu0 %v45
    %v215 = vpop.f32.mrf.mxu0
    %v216 = vadd.f32 %v120, %v215
    %v217 = vpop.f32.mrf.mxu0
    %v218 = vadd.f32 %v124, %v217
    %219 = vmatprep.mubr.f32.mxu0 0.0
    %220 = vmatmul.mubr.f32.gmra.mxu0 %v46
    %v221 = vpop.f32.mrf.mxu0
    %v222 = vadd.f32 %v120, %v221
    %v223 = vpop.f32.mrf.mxu0
    %v224 = vadd.f32 %v124, %v223
    %225 = vmatprep.mubr.f32.mxu0 0.0
    %226 = vmatmul.mubr.f32.gmra.mxu0 %v47
    %v227 = vpop.f32.mrf.mxu0
    %v228 = vadd.f32 %v120, %v227
    %v229 = vpop.f32.mrf.mxu0
    %v230 = vadd.f32 %v124, %v229
    %231 = vmatprep.mubr.f32.mxu0 0.0
    %232 = vmatmul.mubr.f32.gmra.mxu0 %v48
    %v233 = vpop.f32.mrf.mxu0
    %v234 = vadd.f32 %v120, %v233
    %v235 = vpop.f32.mrf.mxu0
    %v236 = vadd.f32 %v124, %v235
    %237 = vmatprep.mubr.f32.mxu0 0.0
    %238 = vmatmul.mubr.f32.gmra.mxu0 %v49
    %v239 = vpop.f32.mrf.mxu0
    %v240 = vadd.f32 %v120, %v239
    %v241 = vpop.f32.mrf.mxu0
    %v242 = vadd.f32 %v124, %v241
    %243 = vmatprep.mubr.f32.mxu0 0.0
    %244 = vmatmul.mubr.f32.gmra.mxu0 %v50
    %v245 = vpop.f32.mrf.mxu0
    %v246 = vadd.f32 %v120, %v245
    %v247 = vpop.f32.mrf.mxu0
    %v248 = vadd.f32 %v124, %v247
    %249 = vdwg.mxu0
    %250 = vmatprep.subr.mxu0 %v114
    %251 = vmatpush1.msra.mxu0 %v113
    %252 = vmatprep.subr.mxu0 %v110
    %253 = vmatpush1.msra.mxu0 %v109
    %254 = vmatprep.subr.mxu0 %v106
    %255 = vmatpush1.msra.mxu0 %v105
    %256 = vmatprep.subr.mxu0 %v102
    %257 = vmatpush1.msra.mxu0 %v101
    %258 = vmatprep.subr.mxu0 %v98
    %259 = vmatpush1.msra.mxu0 %v97
    %260 = vmatprep.subr.mxu0 %v94
    %261 = vmatpush1.msra.mxu0 %v93
    %262 = vmatprep.subr.mxu0 %v90
    %263 = vmatpush1.msra.mxu0 %v89
    %264 = vmatprep.subr.mxu0 %v86
    %265 = vmatpush1.msra.mxu0 %v85
    %266 = vmatprep.subr.mxu0 %v82
    %267 = vmatpush1.msra.mxu0 %v81
    %268 = vmatprep.subr.mxu0 %v78
    %269 = vmatpush1.msra.mxu0 %v77
    %270 = vmatprep.subr.mxu0 %v74
    %271 = vmatpush1.msra.mxu0 %v73
    %272 = vmatprep.subr.mxu0 %v70
    %273 = vmatpush1.msra.mxu0 %v69
    %274 = vmatprep.subr.mxu0 %v66
    %275 = vmatpush1.msra.mxu0 %v65
    %276 = vmatprep.subr.mxu0 %v62
    %277 = vmatpush1.msra.mxu0 %v61
    %278 = vmatprep.subr.mxu0 %v58
    %279 = vmatpush1.msra.mxu0 %v57
    %280 = vmatprep.subr.mxu0 %v54
    %281 = vmatpush1.msra.mxu0 %v53
    %282 = vmatprep.subr.mxu0 0.0
    %283 = vmatpush2.msra.mxu0 0.0
    %284 = vmatprep.subr.mxu0 0.0
    %285 = vmatpush2.msra.mxu0 0.0
    %286 = vmatprep.subr.mxu0 0.0
    %287 = vmatpush2.msra.mxu0 0.0
    %288 = vmatprep.subr.mxu0 0.0
    %289 = vmatpush2.msra.mxu0 0.0
    %290 = vmatprep.subr.mxu0 0.0
    %291 = vmatpush2.msra.mxu0 0.0
    %292 = vmatprep.subr.mxu0 0.0
    %293 = vmatpush2.msra.mxu0 0.0
    %294 = vmatprep.subr.mxu0 0.0
    %295 = vmatpush2.msra.mxu0 0.0
    %296 = vmatprep.subr.mxu0 0.0
    %297 = vmatpush2.msra.mxu0 0.0
    %298 = vmatprep.subr.mxu0 0.0
    %299 = vmatpush2.msra.mxu0 0.0
    %300 = vmatprep.subr.mxu0 0.0
    %301 = vmatpush2.msra.mxu0 0.0
    %302 = vmatprep.subr.mxu0 0.0
    %303 = vmatpush2.msra.mxu0 0.0
    %304 = vmatprep.subr.mxu0 0.0
    %305 = vmatpush2.msra.mxu0 0.0
    %306 = vmatprep.subr.mxu0 0.0
    %307 = vmatpush2.msra.mxu0 0.0
    %308 = vmatprep.subr.mxu0 0.0
    %309 = vmatpush2.msra.mxu0 0.0
    %310 = vmatprep.subr.mxu0 0.0
    %311 = vmatpush2.msra.mxu0 0.0
    %312 = vmatprep.subr.mxu0 0.0
    %313 = vmatpush2.msra.mxu0 0.0
    %314 = vmatprep.mubr.f32.mxu0 0.0
    %315 = vmatmul.mubr.f32.gmra.mxu0 %v43
    %v316 = vpop.f32.mrf.mxu0
    %v317 = vadd.f32 %v128, %v316
    %v318 = vpop.f32.mrf.mxu0
    %v319 = vadd.f32 %v132, %v318
    %320 = vmatprep.mubr.f32.mxu0 0.0
    %321 = vmatmul.mubr.f32.gmra.mxu0 %v44
    %v322 = vpop.f32.mrf.mxu0
    %v323 = vadd.f32 %v128, %v322
    %v324 = vpop.f32.mrf.mxu0
    %v325 = vadd.f32 %v132, %v324
    %326 = vmatprep.mubr.f32.mxu0 0.0
    %327 = vmatmul.mubr.f32.gmra.mxu0 %v45
    %v328 = vpop.f32.mrf.mxu0
    %v329 = vadd.f32 %v128, %v328
    %v330 = vpop.f32.mrf.mxu0
    %v331 = vadd.f32 %v132, %v330
    %332 = vmatprep.mubr.f32.mxu0 0.0
    %333 = vmatmul.mubr.f32.gmra.mxu0 %v46
    %v334 = vpop.f32.mrf.mxu0
    %v335 = vadd.f32 %v128, %v334
    %v336 = vpop.f32.mrf.mxu0
    %v337 = vadd.f32 %v132, %v336
    %338 = vmatprep.mubr.f32.mxu0 0.0
    %339 = vmatmul.mubr.f32.gmra.mxu0 %v47
    %v340 = vpop.f32.mrf.mxu0
    %v341 = vadd.f32 %v128, %v340
    %v342 = vpop.f32.mrf.mxu0
    %v343 = vadd.f32 %v132, %v342
    %344 = vmatprep.mubr.f32.mxu0 0.0
    %345 = vmatmul.mubr.f32.gmra.mxu0 %v48
    %v346 = vpop.f32.mrf.mxu0
    %v347 = vadd.f32 %v128, %v346
    %v348 = vpop.f32.mrf.mxu0
    %v349 = vadd.f32 %v132, %v348
    %350 = vmatprep.mubr.f32.mxu0 0.0
    %351 = vmatmul.mubr.f32.gmra.mxu0 %v49
    %v352 = vpop.f32.mrf.mxu0
    %v353 = vadd.f32 %v128, %v352
    %v354 = vpop.f32.mrf.mxu0
    %v355 = vadd.f32 %v132, %v354
    %356 = vmatprep.mubr.f32.mxu0 0.0
    %357 = vmatmul.mubr.f32.gmra.mxu0 %v50
    %v358 = vpop.f32.mrf.mxu0
    %v359 = vadd.f32 %v128, %v358
    %v360 = vpop.f32.mrf.mxu0
    %v361 = vadd.f32 %v132, %v360
    %362 = vdwg.mxu0
    %363 = vst [vmem:[#allocation2] sm:$0xff] %v204
    %364 = vst [vmem:[#allocation2 + $0x8] sm:$0xff] %v206
    %365 = vst [vmem:[#allocation2 + $0x10] sm:$0xff] %v317
    %366 = vst [vmem:[#allocation2 + $0x18] sm:$0xff] %v319
    %367 = vst [vmem:[#allocation2 + $0x20] sm:$0xff] %v210
    %368 = vst [vmem:[#allocation2 + $0x28] sm:$0xff] %v212
    %369 = vst [vmem:[#allocation2 + $0x30] sm:$0xff] %v323
    %370 = vst [vmem:[#allocation2 + $0x38] sm:$0xff] %v325
    %371 = vst [vmem:[#allocation2 + $0x40] sm:$0xff] %v216
    %372 = vst [vmem:[#allocation2 + $0x48] sm:$0xff] %v218
    %373 = vst [vmem:[#allocation2 + $0x50] sm:$0xff] %v329
    %374 = vst [vmem:[#allocation2 + $0x58] sm:$0xff] %v331
    %375 = vst [vmem:[#allocation2 + $0x60] sm:$0xff] %v222
    %376 = vst [vmem:[#allocation2 + $0x68] sm:$0xff] %v224
    %377 = vst [vmem:[#allocation2 + $0x70] sm:$0xff] %v335
    %378 = vst [vmem:[#allocation2 + $0x78] sm:$0xff] %v337
    %379 = vst [vmem:[#allocation2 + $0x80] sm:$0xff] %v228
    %380 = vst [vmem:[#allocation2 + $0x88] sm:$0xff] %v230
    %381 = vst [vmem:[#allocation2 + $0x90] sm:$0xff] %v341
    %382 = vst [vmem:[#allocation2 + $0x98] sm:$0xff] %v343
    %383 = vst [vmem:[#allocation2 + $0xa0] sm:$0xff] %v234
    %384 = vst [vmem:[#allocation2 + $0xa8] sm:$0xff] %v236
    %385 = vst [vmem:[#allocation2 + $0xb0] sm:$0xff] %v347
    %386 = vst [vmem:[#allocation2 + $0xb8] sm:$0xff] %v349
    %387 = vst [vmem:[#allocation2 + $0xc0] sm:$0xff] %v240
    %388 = vst [vmem:[#allocation2 + $0xc8] sm:$0xff] %v242
    %389 = vst [vmem:[#allocation2 + $0xd0] sm:$0xff] %v353
    %390 = vst [vmem:[#allocation2 + $0xd8] sm:$0xff] %v355
    %391 = vst [vmem:[#allocation2 + $0xe0] sm:$0xff] %v246
    %392 = vst [vmem:[#allocation2 + $0xe8] sm:$0xff] %v248
    %393 = vst [vmem:[#allocation2 + $0xf0] sm:$0xff] %v359
    %394 = vst [vmem:[#allocation2 + $0xf8] sm:$0xff] %v361
    %v395 = vld [vmem:[#allocation4] sm:$0xff]
    %v396 = vld [vmem:[#allocation4 + $0x8] sm:$0xff]
    %v397 = vld [vmem:[#allocation4 + $0x10] sm:$0xff]
    %v398 = vld [vmem:[#allocation4 + $0x18] sm:$0xff]
    %v399 = vld [vmem:[#allocation4 + $0x20] sm:$0xff]
    %v400 = vld [vmem:[#allocation4 + $0x28] sm:$0xff]
    %v401 = vld [vmem:[#allocation4 + $0x30] sm:$0xff]
    %v402 = vld [vmem:[#allocation4 + $0x38] sm:$0xff]
    %v403 = vld [vmem:[#allocation4 + $0x40] sm:$0xff]
    %v404 = vld [vmem:[#allocation4 + $0x48] sm:$0xff]
    %v405 = vld [vmem:[#allocation4 + $0x50] sm:$0xff]
    %v406 = vld [vmem:[#allocation4 + $0x58] sm:$0xff]
    %v407 = vld [vmem:[#allocation4 + $0x60] sm:$0xff]
    %v408 = vld [vmem:[#allocation4 + $0x68] sm:$0xff]
    %v409 = vld [vmem:[#allocation4 + $0x70] sm:$0xff]
    %v410 = vld [vmem:[#allocation4 + $0x78] sm:$0xff]
    %v411 = vld [vmem:[#allocation4 + $0x80] sm:$0xff]
    %v412 = vld [vmem:[#allocation4 + $0x88] sm:$0xff]
    %v413 = vld [vmem:[#allocation4 + $0x90] sm:$0xff]
    %v414 = vld [vmem:[#allocation4 + $0x98] sm:$0xff]
    %v415 = vld [vmem:[#allocation4 + $0xa0] sm:$0xff]
    %v416 = vld [vmem:[#allocation4 + $0xa8] sm:$0xff]
    %v417 = vld [vmem:[#allocation4 + $0xb0] sm:$0xff]
    %v418 = vld [vmem:[#allocation4 + $0xb8] sm:$0xff]
    %v419 = vld [vmem:[#allocation4 + $0xc0] sm:$0xff]
    %v420 = vld [vmem:[#allocation4 + $0xc8] sm:$0xff]
    %v421 = vld [vmem:[#allocation4 + $0xd0] sm:$0xff]
    %v422 = vld [vmem:[#allocation4 + $0xd8] sm:$0xff]
    %v423 = vld [vmem:[#allocation4 + $0xe0] sm:$0xff]
    %v424 = vld [vmem:[#allocation4 + $0xe8] sm:$0xff]
    %v425 = vld [vmem:[#allocation4 + $0xf0] sm:$0xff]
    %v426 = vld [vmem:[#allocation4 + $0xf8] sm:$0xff]
    %v427 = vld [vmem:[#allocation4 + $0x100] sm:$0xff]
    %v428 = vld [vmem:[#allocation4 + $0x108] sm:$0xff]
    %v429 = vld [vmem:[#allocation4 + $0x110] sm:$0xff]
    %v430 = vld [vmem:[#allocation4 + $0x118] sm:$0xff]
    %v431 = vld [vmem:[#allocation4 + $0x120] sm:$0xff]
    %v432 = vld [vmem:[#allocation4 + $0x128] sm:$0xff]
    %v433 = vld [vmem:[#allocation4 + $0x130] sm:$0xff]
    %v434 = vld [vmem:[#allocation4 + $0x138] sm:$0xff]
    %v435 = vld [vmem:[#allocation4 + $0x140] sm:$0xff]
    %v436 = vld [vmem:[#allocation4 + $0x148] sm:$0xff]
    %v437 = vld [vmem:[#allocation4 + $0x150] sm:$0xff]
    %v438 = vld [vmem:[#allocation4 + $0x158] sm:$0xff]
    %v439 = vld [vmem:[#allocation4 + $0x160] sm:$0xff]
    %v440 = vld [vmem:[#allocation4 + $0x168] sm:$0xff]
    %v441 = vld [vmem:[#allocation4 + $0x170] sm:$0xff]
    %v442 = vld [vmem:[#allocation4 + $0x178] sm:$0xff]
    %v443 = vld [vmem:[#allocation4 + $0x180] sm:$0xff]
    %v444 = vld [vmem:[#allocation4 + $0x188] sm:$0xff]
    %v445 = vld [vmem:[#allocation4 + $0x190] sm:$0xff]
    %v446 = vld [vmem:[#allocation4 + $0x198] sm:$0xff]
    %v447 = vld [vmem:[#allocation4 + $0x1a0] sm:$0xff]
    %v448 = vld [vmem:[#allocation4 + $0x1a8] sm:$0xff]
    %v449 = vld [vmem:[#allocation4 + $0x1b0] sm:$0xff]
    %v450 = vld [vmem:[#allocation4 + $0x1b8] sm:$0xff]
    %v451 = vld [vmem:[#allocation4 + $0x1c0] sm:$0xff]
    %v452 = vld [vmem:[#allocation4 + $0x1c8] sm:$0xff]
    %v453 = vld [vmem:[#allocation4 + $0x1d0] sm:$0xff]
    %v454 = vld [vmem:[#allocation4 + $0x1d8] sm:$0xff]
    %v455 = vld [vmem:[#allocation4 + $0x1e0] sm:$0xff]
    %v456 = vld [vmem:[#allocation4 + $0x1e8] sm:$0xff]
    %v457 = vld [vmem:[#allocation4 + $0x1f0] sm:$0xff]
    %v458 = vld [vmem:[#allocation4 + $0x1f8] sm:$0xff]
    %s459 = smul.u32 0, 4
    %s460 = smul.addr %s459, 8
    %s461 = scalar_lea.vmem [#allocation2], %s460
    %v462 = vld [vmem:[%s461] sm:$0xff]
    %v463 = vld [vmem:[%s461 + $0x8] sm:$0xff]
    %v464 = vld [vmem:[%s461 + $0x10] sm:$0xff]
    %v465 = vld [vmem:[%s461 + $0x18] sm:$0xff]
    %466 = vmatprep.subr.mxu0 %v456
    %467 = vmatpush1.msra.mxu0 %v455
    %468 = vmatprep.subr.mxu0 %v452
    %469 = vmatpush1.msra.mxu0 %v451
    %470 = vmatprep.subr.mxu0 %v448
    %471 = vmatpush1.msra.mxu0 %v447
    %472 = vmatprep.subr.mxu0 %v444
    %473 = vmatpush1.msra.mxu0 %v443
    %474 = vmatprep.subr.mxu0 %v440
    %475 = vmatpush1.msra.mxu0 %v439
    %476 = vmatprep.subr.mxu0 %v436
    %477 = vmatpush1.msra.mxu0 %v435
    %478 = vmatprep.subr.mxu0 %v432
    %479 = vmatpush1.msra.mxu0 %v431
    %480 = vmatprep.subr.mxu0 %v428
    %481 = vmatpush1.msra.mxu0 %v427
    %482 = vmatprep.subr.mxu0 %v424
    %483 = vmatpush1.msra.mxu0 %v423
    %484 = vmatprep.subr.mxu0 %v420
    %485 = vmatpush1.msra.mxu0 %v419
    %486 = vmatprep.subr.mxu0 %v416
    %487 = vmatpush1.msra.mxu0 %v415
    %488 = vmatprep.subr.mxu0 %v412
    %489 = vmatpush1.msra.mxu0 %v411
    %490 = vmatprep.subr.mxu0 %v408
    %491 = vmatpush1.msra.mxu0 %v407
    %492 = vmatprep.subr.mxu0 %v404
    %493 = vmatpush1.msra.mxu0 %v403
    %494 = vmatprep.subr.mxu0 %v400
    %495 = vmatpush1.msra.mxu0 %v399
    %496 = vmatprep.subr.mxu0 %v396
    %497 = vmatpush1.msra.mxu0 %v395
    %498 = vmatprep.subr.mxu0 0.0
    %499 = vmatpush2.msra.mxu0 0.0
    %500 = vmatprep.subr.mxu0 0.0
    %501 = vmatpush2.msra.mxu0 0.0
    %502 = vmatprep.subr.mxu0 0.0
    %503 = vmatpush2.msra.mxu0 0.0
    %504 = vmatprep.subr.mxu0 0.0
    %505 = vmatpush2.msra.mxu0 0.0
    %506 = vmatprep.subr.mxu0 0.0
    %507 = vmatpush2.msra.mxu0 0.0
    %508 = vmatprep.subr.mxu0 0.0
    %509 = vmatpush2.msra.mxu0 0.0
    %510 = vmatprep.subr.mxu0 0.0
    %511 = vmatpush2.msra.mxu0 0.0
    %512 = vmatprep.subr.mxu0 0.0
    %513 = vmatpush2.msra.mxu0 0.0
    %514 = vmatprep.subr.mxu0 0.0
    %515 = vmatpush2.msra.mxu0 0.0
    %516 = vmatprep.subr.mxu0 0.0
    %517 = vmatpush2.msra.mxu0 0.0
    %518 = vmatprep.subr.mxu0 0.0
    %519 = vmatpush2.msra.mxu0 0.0
    %520 = vmatprep.subr.mxu0 0.0
    %521 = vmatpush2.msra.mxu0 0.0
    %522 = vmatprep.subr.mxu0 0.0
    %523 = vmatpush2.msra.mxu0 0.0
    %524 = vmatprep.subr.mxu0 0.0
    %525 = vmatpush2.msra.mxu0 0.0
    %526 = vmatprep.subr.mxu0 0.0
    %527 = vmatpush2.msra.mxu0 0.0
    %528 = vmatprep.subr.mxu0 0.0
    %529 = vmatpush2.msra.mxu0 0.0
    %530 = vmatprep.mubr.f32.mxu0 0.0
    %531 = vmatmul.mubr.f32.gmra.mxu0 0.0
    %v532 = vpop.f32.mrf.mxu0
    %v533 = vadd.f32 0.0, %v532
    %v534 = vpop.f32.mrf.mxu0
    %v535 = vadd.f32 0.0, %v534
    %536 = vdwg.mxu0
    %537 = vmatprep.subr.mxu0 %v458
    %538 = vmatpush1.msra.mxu0 %v457
    %539 = vmatprep.subr.mxu0 %v454
    %540 = vmatpush1.msra.mxu0 %v453
    %541 = vmatprep.subr.mxu0 %v450
    %542 = vmatpush1.msra.mxu0 %v449
    %543 = vmatprep.subr.mxu0 %v446
    %544 = vmatpush1.msra.mxu0 %v445
    %545 = vmatprep.subr.mxu0 %v442
    %546 = vmatpush1.msra.mxu0 %v441
    %547 = vmatprep.subr.mxu0 %v438
    %548 = vmatpush1.msra.mxu0 %v437
    %549 = vmatprep.subr.mxu0 %v434
    %550 = vmatpush1.msra.mxu0 %v433
    %551 = vmatprep.subr.mxu0 %v430
    %552 = vmatpush1.msra.mxu0 %v429
    %553 = vmatprep.subr.mxu0 %v426
    %554 = vmatpush1.msra.mxu0 %v425
    %555 = vmatprep.subr.mxu0 %v422
    %556 = vmatpush1.msra.mxu0 %v421
    %557 = vmatprep.subr.mxu0 %v418
    %558 = vmatpush1.msra.mxu0 %v417
    %559 = vmatprep.subr.mxu0 %v414
    %560 = vmatpush1.msra.mxu0 %v413
    %561 = vmatprep.subr.mxu0 %v410
    %562 = vmatpush1.msra.mxu0 %v409
    %563 = vmatprep.subr.mxu0 %v406
    %564 = vmatpush1.msra.mxu0 %v405
    %565 = vmatprep.subr.mxu0 %v402
    %566 = vmatpush1.msra.mxu0 %v401
    %567 = vmatprep.subr.mxu0 %v398
    %568 = vmatpush1.msra.mxu0 %v397
    %569 = vmatprep.subr.mxu0 0.0
    %570 = vmatpush2.msra.mxu0 0.0
    %571 = vmatprep.subr.mxu0 0.0
    %572 = vmatpush2.msra.mxu0 0.0
    %573 = vmatprep.subr.mxu0 0.0
    %574 = vmatpush2.msra.mxu0 0.0
    %575 = vmatprep.subr.mxu0 0.0
    %576 = vmatpush2.msra.mxu0 0.0
    %577 = vmatprep.subr.mxu0 0.0
    %578 = vmatpush2.msra.mxu0 0.0
    %579 = vmatprep.subr.mxu0 0.0
    %580 = vmatpush2.msra.mxu0 0.0
    %581 = vmatprep.subr.mxu0 0.0
    %582 = vmatpush2.msra.mxu0 0.0
    %583 = vmatprep.subr.mxu0 0.0
    %584 = vmatpush2.msra.mxu0 0.0
    %585 = vmatprep.subr.mxu0 0.0
    %586 = vmatpush2.msra.mxu0 0.0
    %587 = vmatprep.subr.mxu0 0.0
    %588 = vmatpush2.msra.mxu0 0.0
    %589 = vmatprep.subr.mxu0 0.0
    %590 = vmatpush2.msra.mxu0 0.0
    %591 = vmatprep.subr.mxu0 0.0
    %592 = vmatpush2.msra.mxu0 0.0
    %593 = vmatprep.subr.mxu0 0.0
    %594 = vmatpush2.msra.mxu0 0.0
    %595 = vmatprep.subr.mxu0 0.0
    %596 = vmatpush2.msra.mxu0 0.0
    %597 = vmatprep.subr.mxu0 0.0
    %598 = vmatpush2.msra.mxu0 0.0
    %599 = vmatprep.subr.mxu0 0.0
    %600 = vmatpush2.msra.mxu0 0.0
    %601 = vmatprep.mubr.f32.mxu0 0.0
    %602 = vmatmul.mubr.f32.gmra.mxu0 0.0
    %v603 = vpop.f32.mrf.mxu0
    %v604 = vadd.f32 0.0, %v603
    %v605 = vpop.f32.mrf.mxu0
    %v606 = vadd.f32 0.0, %v605
    %607 = vdwg.mxu0
    %v608 = vadd.f32 %v462, %v533
    %v609 = vadd.f32 %v463, %v535
    %v610 = vadd.f32 %v464, %v604
    %v611 = vadd.f32 %v465, %v606
    %v612 = vxor.u32 %v608, 2147483648
    %v613 = vmul.f32 %v612, 1.442695
    %v614 = vpow.pop %v613
    %v615 = vadd.f32 %v614, 1.0
    %v616 = vrcp.pop %v615
    %v617 = vmul.f32 1.0, %v616
    %v618 = vxor.u32 %v609, 2147483648
    %v619 = vmul.f32 %v618, 1.442695
    %v620 = vpow.pop %v619
    %v621 = vadd.f32 %v620, 1.0
    %v622 = vrcp.pop %v621
    %v623 = vmul.f32 1.0, %v622
    %v624 = vtanh.pop %v610
    %v625 = vxor.u32 %v611, 2147483648
    %v626 = vmul.f32 %v625, 1.442695
    %v627 = vpow.pop %v626
    %v628 = vadd.f32 %v627, 1.0
    %v629 = vrcp.pop %v628
    %v630 = vmul.f32 1.0, %v629
    %v631 = vmul.f32 %v623, 0.0
    %v632 = vmul.f32 %v617, %v624
    %v633 = vadd.f32 %v631, %v632
    %v634 = vtanh.pop %v633
    %v635 = vmul.f32 %v630, %v634
    %636 = vst [vmem:[#allocation3] sm:$0xff] %v635
    %s637 = smul.u32 1, 4
    %s638 = smul.addr %s637, 8
    %s639 = scalar_lea.vmem [#allocation2], %s638
    %v640 = vld [vmem:[%s639] sm:$0xff]
    %v641 = vld [vmem:[%s639 + $0x8] sm:$0xff]
    %v642 = vld [vmem:[%s639 + $0x10] sm:$0xff]
    %v643 = vld [vmem:[%s639 + $0x18] sm:$0xff]
    %644 = vmatprep.subr.mxu0 %v456
    %645 = vmatpush1.msra.mxu0 %v455
    %646 = vmatprep.subr.mxu0 %v452
    %647 = vmatpush1.msra.mxu0 %v451
    %648 = vmatprep.subr.mxu0 %v448
    %649 = vmatpush1.msra.mxu0 %v447
    %650 = vmatprep.subr.mxu0 %v444
    %651 = vmatpush1.msra.mxu0 %v443
    %652 = vmatprep.subr.mxu0 %v440
    %653 = vmatpush1.msra.mxu0 %v439
    %654 = vmatprep.subr.mxu0 %v436
    %655 = vmatpush1.msra.mxu0 %v435
    %656 = vmatprep.subr.mxu0 %v432
    %657 = vmatpush1.msra.mxu0 %v431
    %658 = vmatprep.subr.mxu0 %v428
    %659 = vmatpush1.msra.mxu0 %v427
    %660 = vmatprep.subr.mxu0 %v424
    %661 = vmatpush1.msra.mxu0 %v423
    %662 = vmatprep.subr.mxu0 %v420
    %663 = vmatpush1.msra.mxu0 %v419
    %664 = vmatprep.subr.mxu0 %v416
    %665 = vmatpush1.msra.mxu0 %v415
    %666 = vmatprep.subr.mxu0 %v412
    %667 = vmatpush1.msra.mxu0 %v411
    %668 = vmatprep.subr.mxu0 %v408
    %669 = vmatpush1.msra.mxu0 %v407
    %670 = vmatprep.subr.mxu0 %v404
    %671 = vmatpush1.msra.mxu0 %v403
    %672 = vmatprep.subr.mxu0 %v400
    %673 = vmatpush1.msra.mxu0 %v399
    %674 = vmatprep.subr.mxu0 %v396
    %675 = vmatpush1.msra.mxu0 %v395
    %676 = vmatprep.subr.mxu0 0.0
    %677 = vmatpush2.msra.mxu0 0.0
    %678 = vmatprep.subr.mxu0 0.0
    %679 = vmatpush2.msra.mxu0 0.0
    %680 = vmatprep.subr.mxu0 0.0
    %681 = vmatpush2.msra.mxu0 0.0
    %682 = vmatprep.subr.mxu0 0.0
    %683 = vmatpush2.msra.mxu0 0.0
    %684 = vmatprep.subr.mxu0 0.0
    %685 = vmatpush2.msra.mxu0 0.0
    %686 = vmatprep.subr.mxu0 0.0
    %687 = vmatpush2.msra.mxu0 0.0
    %688 = vmatprep.subr.mxu0 0.0
    %689 = vmatpush2.msra.mxu0 0.0
    %690 = vmatprep.subr.mxu0 0.0
    %691 = vmatpush2.msra.mxu0 0.0
    %692 = vmatprep.subr.mxu0 0.0
    %693 = vmatpush2.msra.mxu0 0.0
    %694 = vmatprep.subr.mxu0 0.0
    %695 = vmatpush2.msra.mxu0 0.0
    %696 = vmatprep.subr.mxu0 0.0
    %697 = vmatpush2.msra.mxu0 0.0
    %698 = vmatprep.subr.mxu0 0.0
    %699 = vmatpush2.msra.mxu0 0.0
    %700 = vmatprep.subr.mxu0 0.0
    %701 = vmatpush2.msra.mxu0 0.0
    %702 = vmatprep.subr.mxu0 0.0
    %703 = vmatpush2.msra.mxu0 0.0
    %704 = vmatprep.subr.mxu0 0.0
    %705 = vmatpush2.msra.mxu0 0.0
    %706 = vmatprep.subr.mxu0 0.0
    %707 = vmatpush2.msra.mxu0 0.0
    %708 = vmatprep.mubr.f32.mxu0 0.0
    %709 = vmatmul.mubr.f32.gmra.mxu0 %v635
    %v710 = vpop.f32.mrf.mxu0
    %v711 = vadd.f32 0.0, %v710
    %v712 = vpop.f32.mrf.mxu0
    %v713 = vadd.f32 0.0, %v712
    %714 = vdwg.mxu0
    %715 = vmatprep.subr.mxu0 %v458
    %716 = vmatpush1.msra.mxu0 %v457
    %717 = vmatprep.subr.mxu0 %v454
    %718 = vmatpush1.msra.mxu0 %v453
    %719 = vmatprep.subr.mxu0 %v450
    %720 = vmatpush1.msra.mxu0 %v449
    %721 = vmatprep.subr.mxu0 %v446
    %722 = vmatpush1.msra.mxu0 %v445
    %723 = vmatprep.subr.mxu0 %v442
    %724 = vmatpush1.msra.mxu0 %v441
    %725 = vmatprep.subr.mxu0 %v438
    %726 = vmatpush1.msra.mxu0 %v437
    %727 = vmatprep.subr.mxu0 %v434
    %728 = vmatpush1.msra.mxu0 %v433
    %729 = vmatprep.subr.mxu0 %v430
    %730 = vmatpush1.msra.mxu0 %v429
    %731 = vmatprep.subr.mxu0 %v426
    %732 = vmatpush1.msra.mxu0 %v425
    %733 = vmatprep.subr.mxu0 %v422
    %734 = vmatpush1.msra.mxu0 %v421
    %735 = vmatprep.subr.mxu0 %v418
    %736 = vmatpush1.msra.mxu0 %v417
    %737 = vmatprep.subr.mxu0 %v414
    %738 = vmatpush1.msra.mxu0 %v413
    %739 = vmatprep.subr.mxu0 %v410
    %740 = vmatpush1.msra.mxu0 %v409
    %741 = vmatprep.subr.mxu0 %v406
    %742 = vmatpush1.msra.mxu0 %v405
    %743 = vmatprep.subr.mxu0 %v402
    %744 = vmatpush1.msra.mxu0 %v401
    %745 = vmatprep.subr.mxu0 %v398
    %746 = vmatpush1.msra.mxu0 %v397
    %747 = vmatprep.subr.mxu0 0.0
    %748 = vmatpush2.msra.mxu0 0.0
    %749 = vmatprep.subr.mxu0 0.0
    %750 = vmatpush2.msra.mxu0 0.0
    %751 = vmatprep.subr.mxu0 0.0
    %752 = vmatpush2.msra.mxu0 0.0
    %753 = vmatprep.subr.mxu0 0.0
    %754 = vmatpush2.msra.mxu0 0.0
    %755 = vmatprep.subr.mxu0 0.0
    %756 = vmatpush2.msra.mxu0 0.0
    %757 = vmatprep.subr.mxu0 0.0
    %758 = vmatpush2.msra.mxu0 0.0
    %759 = vmatprep.subr.mxu0 0.0
    %760 = vmatpush2.msra.mxu0 0.0
    %761 = vmatprep.subr.mxu0 0.0
    %762 = vmatpush2.msra.mxu0 0.0
    %763 = vmatprep.subr.mxu0 0.0
    %764 = vmatpush2.msra.mxu0 0.0
    %765 = vmatprep.subr.mxu0 0.0
    %766 = vmatpush2.msra.mxu0 0.0
    %767 = vmatprep.subr.mxu0 0.0
    %768 = vmatpush2.msra.mxu0 0.0
    %769 = vmatprep.subr.mxu0 0.0
    %770 = vmatpush2.msra.mxu0 0.0
    %771 = vmatprep.subr.mxu0 0.0
    %772 = vmatpush2.msra.mxu0 0.0
    %773 = vmatprep.subr.mxu0 0.0
    %774 = vmatpush2.msra.mxu0 0.0
    %775 = vmatprep.subr.mxu0 0.0
    %776 = vmatpush2.msra.mxu0 0.0
    %777 = vmatprep.subr.mxu0 0.0
    %778 = vmatpush2.msra.mxu0 0.0
    %779 = vmatprep.mubr.f32.mxu0 0.0
    %780 = vmatmul.mubr.f32.gmra.mxu0 %v635
    %v781 = vpop.f32.mrf.mxu0
    %v782 = vadd.f32 0.0, %v781
    %v783 = vpop.f32.mrf.mxu0
    %v784 = vadd.f32 0.0, %v783
    %785 = vdwg.mxu0
    %v786 = vadd.f32 %v640, %v711
    %v787 = vadd.f32 %v641, %v713
    %v788 = vadd.f32 %v642, %v782
    %v789 = vadd.f32 %v643, %v784
    %v790 = vxor.u32 %v786, 2147483648
    %v791 = vmul.f32 %v790, 1.442695
    %v792 = vpow.pop %v791
    %v793 = vadd.f32 %v792, 1.0
    %v794 = vrcp.pop %v793
    %v795 = vmul.f32 1.0, %v794
    %v796 = vxor.u32 %v787, 2147483648
    %v797 = vmul.f32 %v796, 1.442695
    %v798 = vpow.pop %v797
    %v799 = vadd.f32 %v798, 1.0
    %v800 = vrcp.pop %v799
    %v801 = vmul.f32 1.0, %v800
    %v802 = vtanh.pop %v788
    %v803 = vxor.u32 %v789, 2147483648
    %v804 = vmul.f32 %v803, 1.442695
    %v805 = vpow.pop %v804
    %v806 = vadd.f32 %v805, 1.0
    %v807 = vrcp.pop %v806
    %v808 = vmul.f32 1.0, %v807
    %v809 = vmul.f32 %v801, %v633
    %v810 = vmul.f32 %v795, %v802
    %v811 = vadd.f32 %v809, %v810
    %v812 = vtanh.pop %v811
    %v813 = vmul.f32 %v808, %v812
    %s814 = scalar_lea.vmem [#allocation3], 8
    %815 = vst [vmem:[%s814] sm:$0xff] %v813
    %s816 = smul.u32 2, 4
    %s817 = smul.addr %s816, 8
    %s818 = scalar_lea.vmem [#allocation2], %s817
    %v819 = vld [vmem:[%s818] sm:$0xff]
    %v820 = vld [vmem:[%s818 + $0x8] sm:$0xff]
    %v821 = vld [vmem:[%s818 + $0x10] sm:$0xff]
    %v822 = vld [vmem:[%s818 + $0x18] sm:$0xff]
    %823 = vmatprep.subr.mxu0 %v456
    %824 = vmatpush1.msra.mxu0 %v455
    %825 = vmatprep.subr.mxu0 %v452
    %826 = vmatpush1.msra.mxu0 %v451
    %827 = vmatprep.subr.mxu0 %v448
    %828 = vmatpush1.msra.mxu0 %v447
    %829 = vmatprep.subr.mxu0 %v444
    %830 = vmatpush1.msra.mxu0 %v443
    %831 = vmatprep.subr.mxu0 %v440
    %832 = vmatpush1.msra.mxu0 %v439
    %833 = vmatprep.subr.mxu0 %v436
    %834 = vmatpush1.msra.mxu0 %v435
    %835 = vmatprep.subr.mxu0 %v432
    %836 = vmatpush1.msra.mxu0 %v431
    %837 = vmatprep.subr.mxu0 %v428
    %838 = vmatpush1.msra.mxu0 %v427
    %839 = vmatprep.subr.mxu0 %v424
    %840 = vmatpush1.msra.mxu0 %v423
    %841 = vmatprep.subr.mxu0 %v420
    %842 = vmatpush1.msra.mxu0 %v419
    %843 = vmatprep.subr.mxu0 %v416
    %844 = vmatpush1.msra.mxu0 %v415
    %845 = vmatprep.subr.mxu0 %v412
    %846 = vmatpush1.msra.mxu0 %v411
    %847 = vmatprep.subr.mxu0 %v408
    %848 = vmatpush1.msra.mxu0 %v407
    %849 = vmatprep.subr.mxu0 %v404
    %850 = vmatpush1.msra.mxu0 %v403
    %851 = vmatprep.subr.mxu0 %v400
    %852 = vmatpush1.msra.mxu0 %v399
    %853 = vmatprep.subr.mxu0 %v396
    %854 = vmatpush1.msra.mxu0 %v395
    %855 = vmatprep.subr.mxu0 0.0
    %856 = vmatpush2.msra.mxu0 0.0
    %857 = vmatprep.subr.mxu0 0.0
    %858 = vmatpush2.msra.mxu0 0.0
    %859 = vmatprep.subr.mxu0 0.0
    %860 = vmatpush2.msra.mxu0 0.0
    %861 = vmatprep.subr.mxu0 0.0
    %862 = vmatpush2.msra.mxu0 0.0
    %863 = vmatprep.subr.mxu0 0.0
    %864 = vmatpush2.msra.mxu0 0.0
    %865 = vmatprep.subr.mxu0 0.0
    %866 = vmatpush2.msra.mxu0 0.0
    %867 = vmatprep.subr.mxu0 0.0
    %868 = vmatpush2.msra.mxu0 0.0
    %869 = vmatprep.subr.mxu0 0.0
    %870 = vmatpush2.msra.mxu0 0.0
    %871 = vmatprep.subr.mxu0 0.0
    %872 = vmatpush2.msra.mxu0 0.0
    %873 = vmatprep.subr.mxu0 0.0
    %874 = vmatpush2.msra.mxu0 0.0
    %875 = vmatprep.subr.mxu0 0.0
    %876 = vmatpush2.msra.mxu0 0.0
    %877 = vmatprep.subr.mxu0 0.0
    %878 = vmatpush2.msra.mxu0 0.0
    %879 = vmatprep.subr.mxu0 0.0
    %880 = vmatpush2.msra.mxu0 0.0
    %881 = vmatprep.subr.mxu0 0.0
    %882 = vmatpush2.msra.mxu0 0.0
    %883 = vmatprep.subr.mxu0 0.0
    %884 = vmatpush2.msra.mxu0 0.0
    %885 = vmatprep.subr.mxu0 0.0
    %886 = vmatpush2.msra.mxu0 0.0
    %887 = vmatprep.mubr.f32.mxu0 0.0
    %888 = vmatmul.mubr.f32.gmra.mxu0 %v813
    %v889 = vpop.f32.mrf.mxu0
    %v890 = vadd.f32 0.0, %v889
    %v891 = vpop.f32.mrf.mxu0
    %v892 = vadd.f32 0.0, %v891
    %893 = vdwg.mxu0
    %894 = vmatprep.subr.mxu0 %v458
    %895 = vmatpush1.msra.mxu0 %v457
    %896 = vmatprep.subr.mxu0 %v454
    %897 = vmatpush1.msra.mxu0 %v453
    %898 = vmatprep.subr.mxu0 %v450
    %899 = vmatpush1.msra.mxu0 %v449
    %900 = vmatprep.subr.mxu0 %v446
    %901 = vmatpush1.msra.mxu0 %v445
    %902 = vmatprep.subr.mxu0 %v442
    %903 = vmatpush1.msra.mxu0 %v441
    %904 = vmatprep.subr.mxu0 %v438
    %905 = vmatpush1.msra.mxu0 %v437
    %906 = vmatprep.subr.mxu0 %v434
    %907 = vmatpush1.msra.mxu0 %v433
    %908 = vmatprep.subr.mxu0 %v430
    %909 = vmatpush1.msra.mxu0 %v429
    %910 = vmatprep.subr.mxu0 %v426
    %911 = vmatpush1.msra.mxu0 %v425
    %912 = vmatprep.subr.mxu0 %v422
    %913 = vmatpush1.msra.mxu0 %v421
    %914 = vmatprep.subr.mxu0 %v418
    %915 = vmatpush1.msra.mxu0 %v417
    %916 = vmatprep.subr.mxu0 %v414
    %917 = vmatpush1.msra.mxu0 %v413
    %918 = vmatprep.subr.mxu0 %v410
    %919 = vmatpush1.msra.mxu0 %v409
    %920 = vmatprep.subr.mxu0 %v406
    %921 = vmatpush1.msra.mxu0 %v405
    %922 = vmatprep.subr.mxu0 %v402
    %923 = vmatpush1.msra.mxu0 %v401
    %924 = vmatprep.subr.mxu0 %v398
    %925 = vmatpush1.msra.mxu0 %v397
    %926 = vmatprep.subr.mxu0 0.0
    %927 = vmatpush2.msra.mxu0 0.0
    %928 = vmatprep.subr.mxu0 0.0
    %929 = vmatpush2.msra.mxu0 0.0
    %930 = vmatprep.subr.mxu0 0.0
    %931 = vmatpush2.msra.mxu0 0.0
    %932 = vmatprep.subr.mxu0 0.0
    %933 = vmatpush2.msra.mxu0 0.0
    %934 = vmatprep.subr.mxu0 0.0
    %935 = vmatpush2.msra.mxu0 0.0
    %936 = vmatprep.subr.mxu0 0.0
    %937 = vmatpush2.msra.mxu0 0.0
    %938 = vmatprep.subr.mxu0 0.0
    %939 = vmatpush2.msra.mxu0 0.0
    %940 = vmatprep.subr.mxu0 0.0
    %941 = vmatpush2.msra.mxu0 0.0
    %942 = vmatprep.subr.mxu0 0.0
    %943 = vmatpush2.msra.mxu0 0.0
    %944 = vmatprep.subr.mxu0 0.0
    %945 = vmatpush2.msra.mxu0 0.0
    %946 = vmatprep.subr.mxu0 0.0
    %947 = vmatpush2.msra.mxu0 0.0
    %948 = vmatprep.subr.mxu0 0.0
    %949 = vmatpush2.msra.mxu0 0.0
    %950 = vmatprep.subr.mxu0 0.0
    %951 = vmatpush2.msra.mxu0 0.0
    %952 = vmatprep.subr.mxu0 0.0
    %953 = vmatpush2.msra.mxu0 0.0
    %954 = vmatprep.subr.mxu0 0.0
    %955 = vmatpush2.msra.mxu0 0.0
    %956 = vmatprep.subr.mxu0 0.0
    %957 = vmatpush2.msra.mxu0 0.0
    %958 = vmatprep.mubr.f32.mxu0 0.0
    %959 = vmatmul.mubr.f32.gmra.mxu0 %v813
    %v960 = vpop.f32.mrf.mxu0
    %v961 = vadd.f32 0.0, %v960
    %v962 = vpop.f32.mrf.mxu0
    %v963 = vadd.f32 0.0, %v962
    %964 = vdwg.mxu0
    %v965 = vadd.f32 %v819, %v890
    %v966 = vadd.f32 %v820, %v892
    %v967 = vadd.f32 %v821, %v961
    %v968 = vadd.f32 %v822, %v963
    %v969 = vxor.u32 %v965, 2147483648
    %v970 = vmul.f32 %v969, 1.442695
    %v971 = vpow.pop %v970
    %v972 = vadd.f32 %v971, 1.0
    %v973 = vrcp.pop %v972
    %v974 = vmul.f32 1.0, %v973
    %v975 = vxor.u32 %v966, 2147483648
    %v976 = vmul.f32 %v975, 1.442695
    %v977 = vpow.pop %v976
    %v978 = vadd.f32 %v977, 1.0
    %v979 = vrcp.pop %v978
    %v980 = vmul.f32 1.0, %v979
    %v981 = vtanh.pop %v967
    %v982 = vxor.u32 %v968, 2147483648
    %v983 = vmul.f32 %v982, 1.442695
    %v984 = vpow.pop %v983
    %v985 = vadd.f32 %v984, 1.0
    %v986 = vrcp.pop %v985
    %v987 = vmul.f32 1.0, %v986
    %v988 = vmul.f32 %v980, %v811
    %v989 = vmul.f32 %v974, %v981
    %v990 = vadd.f32 %v988, %v989
    %v991 = vtanh.pop %v990
    %v992 = vmul.f32 %v987, %v991
    %s993 = scalar_lea.vmem [#allocation3], 16
    %994 = vst [vmem:[%s993] sm:$0xff] %v992
    %s995 = smul.u32 3, 4
    %s996 = smul.addr %s995, 8
    %s997 = scalar_lea.vmem [#allocation2], %s996
    %v998 = vld [vmem:[%s997] sm:$0xff]
    %v999 = vld [vmem:[%s997 + $0x8] sm:$0xff]
    %v1000 = vld [vmem:[%s997 + $0x10] sm:$0xff]
    %v1001 = vld [vmem:[%s997 + $0x18] sm:$0xff]
    %1002 = vmatprep.subr.mxu0 %v456
    %1003 = vmatpush1.msra.mxu0 %v455
    %1004 = vmatprep.subr.mxu0 %v452
    %1005 = vmatpush1.msra.mxu0 %v451
    %1006 = vmatprep.subr.mxu0 %v448
    %1007 = vmatpush1.msra.mxu0 %v447
    %1008 = vmatprep.subr.mxu0 %v444
    %1009 = vmatpush1.msra.mxu0 %v443
    %1010 = vmatprep.subr.mxu0 %v440
    %1011 = vmatpush1.msra.mxu0 %v439
    %1012 = vmatprep.subr.mxu0 %v436
    %1013 = vmatpush1.msra.mxu0 %v435
    %1014 = vmatprep.subr.mxu0 %v432
    %1015 = vmatpush1.msra.mxu0 %v431
    %1016 = vmatprep.subr.mxu0 %v428
    %1017 = vmatpush1.msra.mxu0 %v427
    %1018 = vmatprep.subr.mxu0 %v424
    %1019 = vmatpush1.msra.mxu0 %v423
    %1020 = vmatprep.subr.mxu0 %v420
    %1021 = vmatpush1.msra.mxu0 %v419
    %1022 = vmatprep.subr.mxu0 %v416
    %1023 = vmatpush1.msra.mxu0 %v415
    %1024 = vmatprep.subr.mxu0 %v412
    %1025 = vmatpush1.msra.mxu0 %v411
    %1026 = vmatprep.subr.mxu0 %v408
    %1027 = vmatpush1.msra.mxu0 %v407
    %1028 = vmatprep.subr.mxu0 %v404
    %1029 = vmatpush1.msra.mxu0 %v403
    %1030 = vmatprep.subr.mxu0 %v400
    %1031 = vmatpush1.msra.mxu0 %v399
    %1032 = vmatprep.subr.mxu0 %v396
    %1033 = vmatpush1.msra.mxu0 %v395
    %1034 = vmatprep.subr.mxu0 0.0
    %1035 = vmatpush2.msra.mxu0 0.0
    %1036 = vmatprep.subr.mxu0 0.0
    %1037 = vmatpush2.msra.mxu0 0.0
    %1038 = vmatprep.subr.mxu0 0.0
    %1039 = vmatpush2.msra.mxu0 0.0
    %1040 = vmatprep.subr.mxu0 0.0
    %1041 = vmatpush2.msra.mxu0 0.0
    %1042 = vmatprep.subr.mxu0 0.0
    %1043 = vmatpush2.msra.mxu0 0.0
    %1044 = vmatprep.subr.mxu0 0.0
    %1045 = vmatpush2.msra.mxu0 0.0
    %1046 = vmatprep.subr.mxu0 0.0
    %1047 = vmatpush2.msra.mxu0 0.0
    %1048 = vmatprep.subr.mxu0 0.0
    %1049 = vmatpush2.msra.mxu0 0.0
    %1050 = vmatprep.subr.mxu0 0.0
    %1051 = vmatpush2.msra.mxu0 0.0
    %1052 = vmatprep.subr.mxu0 0.0
    %1053 = vmatpush2.msra.mxu0 0.0
    %1054 = vmatprep.subr.mxu0 0.0
    %1055 = vmatpush2.msra.mxu0 0.0
    %1056 = vmatprep.subr.mxu0 0.0
    %1057 = vmatpush2.msra.mxu0 0.0
    %1058 = vmatprep.subr.mxu0 0.0
    %1059 = vmatpush2.msra.mxu0 0.0
    %1060 = vmatprep.subr.mxu0 0.0
    %1061 = vmatpush2.msra.mxu0 0.0
    %1062 = vmatprep.subr.mxu0 0.0
    %1063 = vmatpush2.msra.mxu0 0.0
    %1064 = vmatprep.subr.mxu0 0.0
    %1065 = vmatpush2.msra.mxu0 0.0
    %1066 = vmatprep.mubr.f32.mxu0 0.0
    %1067 = vmatmul.mubr.f32.gmra.mxu0 %v992
    %v1068 = vpop.f32.mrf.mxu0
    %v1069 = vadd.f32 0.0, %v1068
    %v1070 = vpop.f32.mrf.mxu0
    %v1071 = vadd.f32 0.0, %v1070
    %1072 = vdwg.mxu0
    %1073 = vmatprep.subr.mxu0 %v458
    %1074 = vmatpush1.msra.mxu0 %v457
    %1075 = vmatprep.subr.mxu0 %v454
    %1076 = vmatpush1.msra.mxu0 %v453
    %1077 = vmatprep.subr.mxu0 %v450
    %1078 = vmatpush1.msra.mxu0 %v449
    %1079 = vmatprep.subr.mxu0 %v446
    %1080 = vmatpush1.msra.mxu0 %v445
    %1081 = vmatprep.subr.mxu0 %v442
    %1082 = vmatpush1.msra.mxu0 %v441
    %1083 = vmatprep.subr.mxu0 %v438
    %1084 = vmatpush1.msra.mxu0 %v437
    %1085 = vmatprep.subr.mxu0 %v434
    %1086 = vmatpush1.msra.mxu0 %v433
    %1087 = vmatprep.subr.mxu0 %v430
    %1088 = vmatpush1.msra.mxu0 %v429
    %1089 = vmatprep.subr.mxu0 %v426
    %1090 = vmatpush1.msra.mxu0 %v425
    %1091 = vmatprep.subr.mxu0 %v422
    %1092 = vmatpush1.msra.mxu0 %v421
    %1093 = vmatprep.subr.mxu0 %v418
    %1094 = vmatpush1.msra.mxu0 %v417
    %1095 = vmatprep.subr.mxu0 %v414
    %1096 = vmatpush1.msra.mxu0 %v413
    %1097 = vmatprep.subr.mxu0 %v410
    %1098 = vmatpush1.msra.mxu0 %v409
    %1099 = vmatprep.subr.mxu0 %v406
    %1100 = vmatpush1.msra.mxu0 %v405
    %1101 = vmatprep.subr.mxu0 %v402
    %1102 = vmatpush1.msra.mxu0 %v401
    %1103 = vmatprep.subr.mxu0 %v398
    %1104 = vmatpush1.msra.mxu0 %v397
    %1105 = vmatprep.subr.mxu0 0.0
    %1106 = vmatpush2.msra.mxu0 0.0
    %1107 = vmatprep.subr.mxu0 0.0
    %1108 = vmatpush2.msra.mxu0 0.0
    %1109 = vmatprep.subr.mxu0 0.0
    %1110 = vmatpush2.msra.mxu0 0.0
    %1111 = vmatprep.subr.mxu0 0.0
    %1112 = vmatpush2.msra.mxu0 0.0
    %1113 = vmatprep.subr.mxu0 0.0
    %1114 = vmatpush2.msra.mxu0 0.0
    %1115 = vmatprep.subr.mxu0 0.0
    %1116 = vmatpush2.msra.mxu0 0.0
    %1117 = vmatprep.subr.mxu0 0.0
    %1118 = vmatpush2.msra.mxu0 0.0
    %1119 = vmatprep.subr.mxu0 0.0
    %1120 = vmatpush2.msra.mxu0 0.0
    %1121 = vmatprep.subr.mxu0 0.0
    %1122 = vmatpush2.msra.mxu0 0.0
    %1123 = vmatprep.subr.mxu0 0.0
    %1124 = vmatpush2.msra.mxu0 0.0
    %1125 = vmatprep.subr.mxu0 0.0
    %1126 = vmatpush2.msra.mxu0 0.0
    %1127 = vmatprep.subr.mxu0 0.0
    %1128 = vmatpush2.msra.mxu0 0.0
    %1129 = vmatprep.subr.mxu0 0.0
    %1130 = vmatpush2.msra.mxu0 0.0
    %1131 = vmatprep.subr.mxu0 0.0
    %1132 = vmatpush2.msra.mxu0 0.0
    %1133 = vmatprep.subr.mxu0 0.0
    %1134 = vmatpush2.msra.mxu0 0.0
    %1135 = vmatprep.subr.mxu0 0.0
    %1136 = vmatpush2.msra.mxu0 0.0
    %1137 = vmatprep.mubr.f32.mxu0 0.0
    %1138 = vmatmul.mubr.f32.gmra.mxu0 %v992
    %v1139 = vpop.f32.mrf.mxu0
    %v1140 = vadd.f32 0.0, %v1139
    %v1141 = vpop.f32.mrf.mxu0
    %v1142 = vadd.f32 0.0, %v1141
    %1143 = vdwg.mxu0
    %v1144 = vadd.f32 %v998, %v1069
    %v1145 = vadd.f32 %v999, %v1071
    %v1146 = vadd.f32 %v1000, %v1140
    %v1147 = vadd.f32 %v1001, %v1142
    %v1148 = vxor.u32 %v1144, 2147483648
    %v1149 = vmul.f32 %v1148, 1.442695
    %v1150 = vpow.pop %v1149
    %v1151 = vadd.f32 %v1150, 1.0
    %v1152 = vrcp.pop %v1151
    %v1153 = vmul.f32 1.0, %v1152
    %v1154 = vxor.u32 %v1145, 2147483648
    %v1155 = vmul.f32 %v1154, 1.442695
    %v1156 = vpow.pop %v1155
    %v1157 = vadd.f32 %v1156, 1.0
    %v1158 = vrcp.pop %v1157
    %v1159 = vmul.f32 1.0, %v1158
    %v1160 = vtanh.pop %v1146
    %v1161 = vxor.u32 %v1147, 2147483648
    %v1162 = vmul.f32 %v1161, 1.442695
    %v1163 = vpow.pop %v1162
    %v1164 = vadd.f32 %v1163, 1.0
    %v1165 = vrcp.pop %v1164
    %v1166 = vmul.f32 1.0, %v1165
    %v1167 = vmul.f32 %v1159, %v990
    %v1168 = vmul.f32 %v1153, %v1160
    %v1169 = vadd.f32 %v1167, %v1168
    %v1170 = vtanh.pop %v1169
    %v1171 = vmul.f32 %v1166, %v1170
    %s1172 = scalar_lea.vmem [#allocation3], 24
    %1173 = vst [vmem:[%s1172] sm:$0xff] %v1171
    %s1174 = smul.u32 4, 4
    %s1175 = smul.addr %s1174, 8
    %s1176 = scalar_lea.vmem [#allocation2], %s1175
    %v1177 = vld [vmem:[%s1176] sm:$0xff]
    %v1178 = vld [vmem:[%s1176 + $0x8] sm:$0xff]
    %v1179 = vld [vmem:[%s1176 + $0x10] sm:$0xff]
    %v1180 = vld [vmem:[%s1176 + $0x18] sm:$0xff]
    %1181 = vmatprep.subr.mxu0 %v456
    %1182 = vmatpush1.msra.mxu0 %v455
    %1183 = vmatprep.subr.mxu0 %v452
    %1184 = vmatpush1.msra.mxu0 %v451
    %1185 = vmatprep.subr.mxu0 %v448
    %1186 = vmatpush1.msra.mxu0 %v447
    %1187 = vmatprep.subr.mxu0 %v444
    %1188 = vmatpush1.msra.mxu0 %v443
    %1189 = vmatprep.subr.mxu0 %v440
    %1190 = vmatpush1.msra.mxu0 %v439
    %1191 = vmatprep.subr.mxu0 %v436
    %1192 = vmatpush1.msra.mxu0 %v435
    %1193 = vmatprep.subr.mxu0 %v432
    %1194 = vmatpush1.msra.mxu0 %v431
    %1195 = vmatprep.subr.mxu0 %v428
    %1196 = vmatpush1.msra.mxu0 %v427
    %1197 = vmatprep.subr.mxu0 %v424
    %1198 = vmatpush1.msra.mxu0 %v423
    %1199 = vmatprep.subr.mxu0 %v420
    %1200 = vmatpush1.msra.mxu0 %v419
    %1201 = vmatprep.subr.mxu0 %v416
    %1202 = vmatpush1.msra.mxu0 %v415
    %1203 = vmatprep.subr.mxu0 %v412
    %1204 = vmatpush1.msra.mxu0 %v411
    %1205 = vmatprep.subr.mxu0 %v408
    %1206 = vmatpush1.msra.mxu0 %v407
    %1207 = vmatprep.subr.mxu0 %v404
    %1208 = vmatpush1.msra.mxu0 %v403
    %1209 = vmatprep.subr.mxu0 %v400
    %1210 = vmatpush1.msra.mxu0 %v399
    %1211 = vmatprep.subr.mxu0 %v396
    %1212 = vmatpush1.msra.mxu0 %v395
    %1213 = vmatprep.subr.mxu0 0.0
    %1214 = vmatpush2.msra.mxu0 0.0
    %1215 = vmatprep.subr.mxu0 0.0
    %1216 = vmatpush2.msra.mxu0 0.0
    %1217 = vmatprep.subr.mxu0 0.0
    %1218 = vmatpush2.msra.mxu0 0.0
    %1219 = vmatprep.subr.mxu0 0.0
    %1220 = vmatpush2.msra.mxu0 0.0
    %1221 = vmatprep.subr.mxu0 0.0
    %1222 = vmatpush2.msra.mxu0 0.0
    %1223 = vmatprep.subr.mxu0 0.0
    %1224 = vmatpush2.msra.mxu0 0.0
    %1225 = vmatprep.subr.mxu0 0.0
    %1226 = vmatpush2.msra.mxu0 0.0
    %1227 = vmatprep.subr.mxu0 0.0
    %1228 = vmatpush2.msra.mxu0 0.0
    %1229 = vmatprep.subr.mxu0 0.0
    %1230 = vmatpush2.msra.mxu0 0.0
    %1231 = vmatprep.subr.mxu0 0.0
    %1232 = vmatpush2.msra.mxu0 0.0
    %1233 = vmatprep.subr.mxu0 0.0
    %1234 = vmatpush2.msra.mxu0 0.0
    %1235 = vmatprep.subr.mxu0 0.0
    %1236 = vmatpush2.msra.mxu0 0.0
    %1237 = vmatprep.subr.mxu0 0.0
    %1238 = vmatpush2.msra.mxu0 0.0
    %1239 = vmatprep.subr.mxu0 0.0
    %1240 = vmatpush2.msra.mxu0 0.0
    %1241 = vmatprep.subr.mxu0 0.0
    %1242 = vmatpush2.msra.mxu0 0.0
    %1243 = vmatprep.subr.mxu0 0.0
    %1244 = vmatpush2.msra.mxu0 0.0
    %1245 = vmatprep.mubr.f32.mxu0 0.0
    %1246 = vmatmul.mubr.f32.gmra.mxu0 %v1171
    %v1247 = vpop.f32.mrf.mxu0
    %v1248 = vadd.f32 0.0, %v1247
    %v1249 = vpop.f32.mrf.mxu0
    %v1250 = vadd.f32 0.0, %v1249
    %1251 = vdwg.mxu0
    %1252 = vmatprep.subr.mxu0 %v458
    %1253 = vmatpush1.msra.mxu0 %v457
    %1254 = vmatprep.subr.mxu0 %v454
    %1255 = vmatpush1.msra.mxu0 %v453
    %1256 = vmatprep.subr.mxu0 %v450
    %1257 = vmatpush1.msra.mxu0 %v449
    %1258 = vmatprep.subr.mxu0 %v446
    %1259 = vmatpush1.msra.mxu0 %v445
    %1260 = vmatprep.subr.mxu0 %v442
    %1261 = vmatpush1.msra.mxu0 %v441
    %1262 = vmatprep.subr.mxu0 %v438
    %1263 = vmatpush1.msra.mxu0 %v437
    %1264 = vmatprep.subr.mxu0 %v434
    %1265 = vmatpush1.msra.mxu0 %v433
    %1266 = vmatprep.subr.mxu0 %v430
    %1267 = vmatpush1.msra.mxu0 %v429
    %1268 = vmatprep.subr.mxu0 %v426
    %1269 = vmatpush1.msra.mxu0 %v425
    %1270 = vmatprep.subr.mxu0 %v422
    %1271 = vmatpush1.msra.mxu0 %v421
    %1272 = vmatprep.subr.mxu0 %v418
    %1273 = vmatpush1.msra.mxu0 %v417
    %1274 = vmatprep.subr.mxu0 %v414
    %1275 = vmatpush1.msra.mxu0 %v413
    %1276 = vmatprep.subr.mxu0 %v410
    %1277 = vmatpush1.msra.mxu0 %v409
    %1278 = vmatprep.subr.mxu0 %v406
    %1279 = vmatpush1.msra.mxu0 %v405
    %1280 = vmatprep.subr.mxu0 %v402
    %1281 = vmatpush1.msra.mxu0 %v401
    %1282 = vmatprep.subr.mxu0 %v398
    %1283 = vmatpush1.msra.mxu0 %v397
    %1284 = vmatprep.subr.mxu0 0.0
    %1285 = vmatpush2.msra.mxu0 0.0
    %1286 = vmatprep.subr.mxu0 0.0
    %1287 = vmatpush2.msra.mxu0 0.0
    %1288 = vmatprep.subr.mxu0 0.0
    %1289 = vmatpush2.msra.mxu0 0.0
    %1290 = vmatprep.subr.mxu0 0.0
    %1291 = vmatpush2.msra.mxu0 0.0
    %1292 = vmatprep.subr.mxu0 0.0
    %1293 = vmatpush2.msra.mxu0 0.0
    %1294 = vmatprep.subr.mxu0 0.0
    %1295 = vmatpush2.msra.mxu0 0.0
    %1296 = vmatprep.subr.mxu0 0.0
    %1297 = vmatpush2.msra.mxu0 0.0
    %1298 = vmatprep.subr.mxu0 0.0
    %1299 = vmatpush2.msra.mxu0 0.0
    %1300 = vmatprep.subr.mxu0 0.0
    %1301 = vmatpush2.msra.mxu0 0.0
    %1302 = vmatprep.subr.mxu0 0.0
    %1303 = vmatpush2.msra.mxu0 0.0
    %1304 = vmatprep.subr.mxu0 0.0
    %1305 = vmatpush2.msra.mxu0 0.0
    %1306 = vmatprep.subr.mxu0 0.0
    %1307 = vmatpush2.msra.mxu0 0.0
    %1308 = vmatprep.subr.mxu0 0.0
    %1309 = vmatpush2.msra.mxu0 0.0
    %1310 = vmatprep.subr.mxu0 0.0
    %1311 = vmatpush2.msra.mxu0 0.0
    %1312 = vmatprep.subr.mxu0 0.0
    %1313 = vmatpush2.msra.mxu0 0.0
    %1314 = vmatprep.subr.mxu0 0.0
    %1315 = vmatpush2.msra.mxu0 0.0
    %1316 = vmatprep.mubr.f32.mxu0 0.0
    %1317 = vmatmul.mubr.f32.gmra.mxu0 %v1171
    %v1318 = vpop.f32.mrf.mxu0
    %v1319 = vadd.f32 0.0, %v1318
    %v1320 = vpop.f32.mrf.mxu0
    %v1321 = vadd.f32 0.0, %v1320
    %1322 = vdwg.mxu0
    %v1323 = vadd.f32 %v1177, %v1248
    %v1324 = vadd.f32 %v1178, %v1250
    %v1325 = vadd.f32 %v1179, %v1319
    %v1326 = vadd.f32 %v1180, %v1321
    %v1327 = vxor.u32 %v1323, 2147483648
    %v1328 = vmul.f32 %v1327, 1.442695
    %v1329 = vpow.pop %v1328
    %v1330 = vadd.f32 %v1329, 1.0
    %v1331 = vrcp.pop %v1330
    %v1332 = vmul.f32 1.0, %v1331
    %v1333 = vxor.u32 %v1324, 2147483648
    %v1334 = vmul.f32 %v1333, 1.442695
    %v1335 = vpow.pop %v1334
    %v1336 = vadd.f32 %v1335, 1.0
    %v1337 = vrcp.pop %v1336
    %v1338 = vmul.f32 1.0, %v1337
    %v1339 = vtanh.pop %v1325
    %v1340 = vxor.u32 %v1326, 2147483648
    %v1341 = vmul.f32 %v1340, 1.442695
    %v1342 = vpow.pop %v1341
    %v1343 = vadd.f32 %v1342, 1.0
    %v1344 = vrcp.pop %v1343
    %v1345 = vmul.f32 1.0, %v1344
    %v1346 = vmul.f32 %v1338, %v1169
    %v1347 = vmul.f32 %v1332, %v1339
    %v1348 = vadd.f32 %v1346, %v1347
    %v1349 = vtanh.pop %v1348
    %v1350 = vmul.f32 %v1345, %v1349
    %s1351 = scalar_lea.vmem [#allocation3], 32
    %1352 = vst [vmem:[%s1351] sm:$0xff] %v1350
    %s1353 = smul.u32 5, 4
    %s1354 = smul.addr %s1353, 8
    %s1355 = scalar_lea.vmem [#allocation2], %s1354
    %v1356 = vld [vmem:[%s1355] sm:$0xff]
    %v1357 = vld [vmem:[%s1355 + $0x8] sm:$0xff]
    %v1358 = vld [vmem:[%s1355 + $0x10] sm:$0xff]
    %v1359 = vld [vmem:[%s1355 + $0x18] sm:$0xff]
    %1360 = vmatprep.subr.mxu0 %v456
    %1361 = vmatpush1.msra.mxu0 %v455
    %1362 = vmatprep.subr.mxu0 %v452
    %1363 = vmatpush1.msra.mxu0 %v451
    %1364 = vmatprep.subr.mxu0 %v448
    %1365 = vmatpush1.msra.mxu0 %v447
    %1366 = vmatprep.subr.mxu0 %v444
    %1367 = vmatpush1.msra.mxu0 %v443
    %1368 = vmatprep.subr.mxu0 %v440
    %1369 = vmatpush1.msra.mxu0 %v439
    %1370 = vmatprep.subr.mxu0 %v436
    %1371 = vmatpush1.msra.mxu0 %v435
    %1372 = vmatprep.subr.mxu0 %v432
    %1373 = vmatpush1.msra.mxu0 %v431
    %1374 = vmatprep.subr.mxu0 %v428
    %1375 = vmatpush1.msra.mxu0 %v427
    %1376 = vmatprep.subr.mxu0 %v424
    %1377 = vmatpush1.msra.mxu0 %v423
    %1378 = vmatprep.subr.mxu0 %v420
    %1379 = vmatpush1.msra.mxu0 %v419
    %1380 = vmatprep.subr.mxu0 %v416
    %1381 = vmatpush1.msra.mxu0 %v415
    %1382 = vmatprep.subr.mxu0 %v412
    %1383 = vmatpush1.msra.mxu0 %v411
    %1384 = vmatprep.subr.mxu0 %v408
    %1385 = vmatpush1.msra.mxu0 %v407
    %1386 = vmatprep.subr.mxu0 %v404
    %1387 = vmatpush1.msra.mxu0 %v403
    %1388 = vmatprep.subr.mxu0 %v400
    %1389 = vmatpush1.msra.mxu0 %v399
    %1390 = vmatprep.subr.mxu0 %v396
    %1391 = vmatpush1.msra.mxu0 %v395
    %1392 = vmatprep.subr.mxu0 0.0
    %1393 = vmatpush2.msra.mxu0 0.0
    %1394 = vmatprep.subr.mxu0 0.0
    %1395 = vmatpush2.msra.mxu0 0.0
    %1396 = vmatprep.subr.mxu0 0.0
    %1397 = vmatpush2.msra.mxu0 0.0
    %1398 = vmatprep.subr.mxu0 0.0
    %1399 = vmatpush2.msra.mxu0 0.0
    %1400 = vmatprep.subr.mxu0 0.0
    %1401 = vmatpush2.msra.mxu0 0.0
    %1402 = vmatprep.subr.mxu0 0.0
    %1403 = vmatpush2.msra.mxu0 0.0
    %1404 = vmatprep.subr.mxu0 0.0
    %1405 = vmatpush2.msra.mxu0 0.0
    %1406 = vmatprep.subr.mxu0 0.0
    %1407 = vmatpush2.msra.mxu0 0.0
    %1408 = vmatprep.subr.mxu0 0.0
    %1409 = vmatpush2.msra.mxu0 0.0
    %1410 = vmatprep.subr.mxu0 0.0
    %1411 = vmatpush2.msra.mxu0 0.0
    %1412 = vmatprep.subr.mxu0 0.0
    %1413 = vmatpush2.msra.mxu0 0.0
    %1414 = vmatprep.subr.mxu0 0.0
    %1415 = vmatpush2.msra.mxu0 0.0
    %1416 = vmatprep.subr.mxu0 0.0
    %1417 = vmatpush2.msra.mxu0 0.0
    %1418 = vmatprep.subr.mxu0 0.0
    %1419 = vmatpush2.msra.mxu0 0.0
    %1420 = vmatprep.subr.mxu0 0.0
    %1421 = vmatpush2.msra.mxu0 0.0
    %1422 = vmatprep.subr.mxu0 0.0
    %1423 = vmatpush2.msra.mxu0 0.0
    %1424 = vmatprep.mubr.f32.mxu0 0.0
    %1425 = vmatmul.mubr.f32.gmra.mxu0 %v1350
    %v1426 = vpop.f32.mrf.mxu0
    %v1427 = vadd.f32 0.0, %v1426
    %v1428 = vpop.f32.mrf.mxu0
    %v1429 = vadd.f32 0.0, %v1428
    %1430 = vdwg.mxu0
    %1431 = vmatprep.subr.mxu0 %v458
    %1432 = vmatpush1.msra.mxu0 %v457
    %1433 = vmatprep.subr.mxu0 %v454
    %1434 = vmatpush1.msra.mxu0 %v453
    %1435 = vmatprep.subr.mxu0 %v450
    %1436 = vmatpush1.msra.mxu0 %v449
    %1437 = vmatprep.subr.mxu0 %v446
    %1438 = vmatpush1.msra.mxu0 %v445
    %1439 = vmatprep.subr.mxu0 %v442
    %1440 = vmatpush1.msra.mxu0 %v441
    %1441 = vmatprep.subr.mxu0 %v438
    %1442 = vmatpush1.msra.mxu0 %v437
    %1443 = vmatprep.subr.mxu0 %v434
    %1444 = vmatpush1.msra.mxu0 %v433
    %1445 = vmatprep.subr.mxu0 %v430
    %1446 = vmatpush1.msra.mxu0 %v429
    %1447 = vmatprep.subr.mxu0 %v426
    %1448 = vmatpush1.msra.mxu0 %v425
    %1449 = vmatprep.subr.mxu0 %v422
    %1450 = vmatpush1.msra.mxu0 %v421
    %1451 = vmatprep.subr.mxu0 %v418
    %1452 = vmatpush1.msra.mxu0 %v417
    %1453 = vmatprep.subr.mxu0 %v414
    %1454 = vmatpush1.msra.mxu0 %v413
    %1455 = vmatprep.subr.mxu0 %v410
    %1456 = vmatpush1.msra.mxu0 %v409
    %1457 = vmatprep.subr.mxu0 %v406
    %1458 = vmatpush1.msra.mxu0 %v405
    %1459 = vmatprep.subr.mxu0 %v402
    %1460 = vmatpush1.msra.mxu0 %v401
    %1461 = vmatprep.subr.mxu0 %v398
    %1462 = vmatpush1.msra.mxu0 %v397
    %1463 = vmatprep.subr.mxu0 0.0
    %1464 = vmatpush2.msra.mxu0 0.0
    %1465 = vmatprep.subr.mxu0 0.0
    %1466 = vmatpush2.msra.mxu0 0.0
    %1467 = vmatprep.subr.mxu0 0.0
    %1468 = vmatpush2.msra.mxu0 0.0
    %1469 = vmatprep.subr.mxu0 0.0
    %1470 = vmatpush2.msra.mxu0 0.0
    %1471 = vmatprep.subr.mxu0 0.0
    %1472 = vmatpush2.msra.mxu0 0.0
    %1473 = vmatprep.subr.mxu0 0.0
    %1474 = vmatpush2.msra.mxu0 0.0
    %1475 = vmatprep.subr.mxu0 0.0
    %1476 = vmatpush2.msra.mxu0 0.0
    %1477 = vmatprep.subr.mxu0 0.0
    %1478 = vmatpush2.msra.mxu0 0.0
    %1479 = vmatprep.subr.mxu0 0.0
    %1480 = vmatpush2.msra.mxu0 0.0
    %1481 = vmatprep.subr.mxu0 0.0
    %1482 = vmatpush2.msra.mxu0 0.0
    %1483 = vmatprep.subr.mxu0 0.0
    %1484 = vmatpush2.msra.mxu0 0.0
    %1485 = vmatprep.subr.mxu0 0.0
    %1486 = vmatpush2.msra.mxu0 0.0
    %1487 = vmatprep.subr.mxu0 0.0
    %1488 = vmatpush2.msra.mxu0 0.0
    %1489 = vmatprep.subr.mxu0 0.0
    %1490 = vmatpush2.msra.mxu0 0.0
    %1491 = vmatprep.subr.mxu0 0.0
    %1492 = vmatpush2.msra.mxu0 0.0
    %1493 = vmatprep.subr.mxu0 0.0
    %1494 = vmatpush2.msra.mxu0 0.0
    %1495 = vmatprep.mubr.f32.mxu0 0.0
    %1496 = vmatmul.mubr.f32.gmra.mxu0 %v1350
    %v1497 = vpop.f32.mrf.mxu0
    %v1498 = vadd.f32 0.0, %v1497
    %v1499 = vpop.f32.mrf.mxu0
    %v1500 = vadd.f32 0.0, %v1499
    %1501 = vdwg.mxu0
    %v1502 = vadd.f32 %v1356, %v1427
    %v1503 = vadd.f32 %v1357, %v1429
    %v1504 = vadd.f32 %v1358, %v1498
    %v1505 = vadd.f32 %v1359, %v1500
    %v1506 = vxor.u32 %v1502, 2147483648
    %v1507 = vmul.f32 %v1506, 1.442695
    %v1508 = vpow.pop %v1507
    %v1509 = vadd.f32 %v1508, 1.0
    %v1510 = vrcp.pop %v1509
    %v1511 = vmul.f32 1.0, %v1510
    %v1512 = vxor.u32 %v1503, 2147483648
    %v1513 = vmul.f32 %v1512, 1.442695
    %v1514 = vpow.pop %v1513
    %v1515 = vadd.f32 %v1514, 1.0
    %v1516 = vrcp.pop %v1515
    %v1517 = vmul.f32 1.0, %v1516
    %v1518 = vtanh.pop %v1504
    %v1519 = vxor.u32 %v1505, 2147483648
    %v1520 = vmul.f32 %v1519, 1.442695
    %v1521 = vpow.pop %v1520
    %v1522 = vadd.f32 %v1521, 1.0
    %v1523 = vrcp.pop %v1522
    %v1524 = vmul.f32 1.0, %v1523
    %v1525 = vmul.f32 %v1517, %v1348
    %v1526 = vmul.f32 %v1511, %v1518
    %v1527 = vadd.f32 %v1525, %v1526
    %v1528 = vtanh.pop %v1527
    %v1529 = vmul.f32 %v1524, %v1528
    %s1530 = scalar_lea.vmem [#allocation3], 40
    %1531 = vst [vmem:[%s1530] sm:$0xff] %v1529
    %s1532 = smul.u32 6, 4
    %s1533 = smul.addr %s1532, 8
    %s1534 = scalar_lea.vmem [#allocation2], %s1533
    %v1535 = vld [vmem:[%s1534] sm:$0xff]
    %v1536 = vld [vmem:[%s1534 + $0x8] sm:$0xff]
    %v1537 = vld [vmem:[%s1534 + $0x10] sm:$0xff]
    %v1538 = vld [vmem:[%s1534 + $0x18] sm:$0xff]
    %1539 = vmatprep.subr.mxu0 %v456
    %1540 = vmatpush1.msra.mxu0 %v455
    %1541 = vmatprep.subr.mxu0 %v452
    %1542 = vmatpush1.msra.mxu0 %v451
    %1543 = vmatprep.subr.mxu0 %v448
    %1544 = vmatpush1.msra.mxu0 %v447
    %1545 = vmatprep.subr.mxu0 %v444
    %1546 = vmatpush1.msra.mxu0 %v443
    %1547 = vmatprep.subr.mxu0 %v440
    %1548 = vmatpush1.msra.mxu0 %v439
    %1549 = vmatprep.subr.mxu0 %v436
    %1550 = vmatpush1.msra.mxu0 %v435
    %1551 = vmatprep.subr.mxu0 %v432
    %1552 = vmatpush1.msra.mxu0 %v431
    %1553 = vmatprep.subr.mxu0 %v428
    %1554 = vmatpush1.msra.mxu0 %v427
    %1555 = vmatprep.subr.mxu0 %v424
    %1556 = vmatpush1.msra.mxu0 %v423
    %1557 = vmatprep.subr.mxu0 %v420
    %1558 = vmatpush1.msra.mxu0 %v419
    %1559 = vmatprep.subr.mxu0 %v416
    %1560 = vmatpush1.msra.mxu0 %v415
    %1561 = vmatprep.subr.mxu0 %v412
    %1562 = vmatpush1.msra.mxu0 %v411
    %1563 = vmatprep.subr.mxu0 %v408
    %1564 = vmatpush1.msra.mxu0 %v407
    %1565 = vmatprep.subr.mxu0 %v404
    %1566 = vmatpush1.msra.mxu0 %v403
    %1567 = vmatprep.subr.mxu0 %v400
    %1568 = vmatpush1.msra.mxu0 %v399
    %1569 = vmatprep.subr.mxu0 %v396
    %1570 = vmatpush1.msra.mxu0 %v395
    %1571 = vmatprep.subr.mxu0 0.0
    %1572 = vmatpush2.msra.mxu0 0.0
    %1573 = vmatprep.subr.mxu0 0.0
    %1574 = vmatpush2.msra.mxu0 0.0
    %1575 = vmatprep.subr.mxu0 0.0
    %1576 = vmatpush2.msra.mxu0 0.0
    %1577 = vmatprep.subr.mxu0 0.0
    %1578 = vmatpush2.msra.mxu0 0.0
    %1579 = vmatprep.subr.mxu0 0.0
    %1580 = vmatpush2.msra.mxu0 0.0
    %1581 = vmatprep.subr.mxu0 0.0
    %1582 = vmatpush2.msra.mxu0 0.0
    %1583 = vmatprep.subr.mxu0 0.0
    %1584 = vmatpush2.msra.mxu0 0.0
    %1585 = vmatprep.subr.mxu0 0.0
    %1586 = vmatpush2.msra.mxu0 0.0
    %1587 = vmatprep.subr.mxu0 0.0
    %1588 = vmatpush2.msra.mxu0 0.0
    %1589 = vmatprep.subr.mxu0 0.0
    %1590 = vmatpush2.msra.mxu0 0.0
    %1591 = vmatprep.subr.mxu0 0.0
    %1592 = vmatpush2.msra.mxu0 0.0
    %1593 = vmatprep.subr.mxu0 0.0
    %1594 = vmatpush2.msra.mxu0 0.0
    %1595 = vmatprep.subr.mxu0 0.0
    %1596 = vmatpush2.msra.mxu0 0.0
    %1597 = vmatprep.subr.mxu0 0.0
    %1598 = vmatpush2.msra.mxu0 0.0
    %1599 = vmatprep.subr.mxu0 0.0
    %1600 = vmatpush2.msra.mxu0 0.0
    %1601 = vmatprep.subr.mxu0 0.0
    %1602 = vmatpush2.msra.mxu0 0.0
    %1603 = vmatprep.mubr.f32.mxu0 0.0
    %1604 = vmatmul.mubr.f32.gmra.mxu0 %v1529
    %v1605 = vpop.f32.mrf.mxu0
    %v1606 = vadd.f32 0.0, %v1605
    %v1607 = vpop.f32.mrf.mxu0
    %v1608 = vadd.f32 0.0, %v1607
    %1609 = vdwg.mxu0
    %1610 = vmatprep.subr.mxu0 %v458
    %1611 = vmatpush1.msra.mxu0 %v457
    %1612 = vmatprep.subr.mxu0 %v454
    %1613 = vmatpush1.msra.mxu0 %v453
    %1614 = vmatprep.subr.mxu0 %v450
    %1615 = vmatpush1.msra.mxu0 %v449
    %1616 = vmatprep.subr.mxu0 %v446
    %1617 = vmatpush1.msra.mxu0 %v445
    %1618 = vmatprep.subr.mxu0 %v442
    %1619 = vmatpush1.msra.mxu0 %v441
    %1620 = vmatprep.subr.mxu0 %v438
    %1621 = vmatpush1.msra.mxu0 %v437
    %1622 = vmatprep.subr.mxu0 %v434
    %1623 = vmatpush1.msra.mxu0 %v433
    %1624 = vmatprep.subr.mxu0 %v430
    %1625 = vmatpush1.msra.mxu0 %v429
    %1626 = vmatprep.subr.mxu0 %v426
    %1627 = vmatpush1.msra.mxu0 %v425
    %1628 = vmatprep.subr.mxu0 %v422
    %1629 = vmatpush1.msra.mxu0 %v421
    %1630 = vmatprep.subr.mxu0 %v418
    %1631 = vmatpush1.msra.mxu0 %v417
    %1632 = vmatprep.subr.mxu0 %v414
    %1633 = vmatpush1.msra.mxu0 %v413
    %1634 = vmatprep.subr.mxu0 %v410
    %1635 = vmatpush1.msra.mxu0 %v409
    %1636 = vmatprep.subr.mxu0 %v406
    %1637 = vmatpush1.msra.mxu0 %v405
    %1638 = vmatprep.subr.mxu0 %v402
    %1639 = vmatpush1.msra.mxu0 %v401
    %1640 = vmatprep.subr.mxu0 %v398
    %1641 = vmatpush1.msra.mxu0 %v397
    %1642 = vmatprep.subr.mxu0 0.0
    %1643 = vmatpush2.msra.mxu0 0.0
    %1644 = vmatprep.subr.mxu0 0.0
    %1645 = vmatpush2.msra.mxu0 0.0
    %1646 = vmatprep.subr.mxu0 0.0
    %1647 = vmatpush2.msra.mxu0 0.0
    %1648 = vmatprep.subr.mxu0 0.0
    %1649 = vmatpush2.msra.mxu0 0.0
    %1650 = vmatprep.subr.mxu0 0.0
    %1651 = vmatpush2.msra.mxu0 0.0
    %1652 = vmatprep.subr.mxu0 0.0
    %1653 = vmatpush2.msra.mxu0 0.0
    %1654 = vmatprep.subr.mxu0 0.0
    %1655 = vmatpush2.msra.mxu0 0.0
    %1656 = vmatprep.subr.mxu0 0.0
    %1657 = vmatpush2.msra.mxu0 0.0
    %1658 = vmatprep.subr.mxu0 0.0
    %1659 = vmatpush2.msra.mxu0 0.0
    %1660 = vmatprep.subr.mxu0 0.0
    %1661 = vmatpush2.msra.mxu0 0.0
    %1662 = vmatprep.subr.mxu0 0.0
    %1663 = vmatpush2.msra.mxu0 0.0
    %1664 = vmatprep.subr.mxu0 0.0
    %1665 = vmatpush2.msra.mxu0 0.0
    %1666 = vmatprep.subr.mxu0 0.0
    %1667 = vmatpush2.msra.mxu0 0.0
    %1668 = vmatprep.subr.mxu0 0.0
    %1669 = vmatpush2.msra.mxu0 0.0
    %1670 = vmatprep.subr.mxu0 0.0
    %1671 = vmatpush2.msra.mxu0 0.0
    %1672 = vmatprep.subr.mxu0 0.0
    %1673 = vmatpush2.msra.mxu0 0.0
    %1674 = vmatprep.mubr.f32.mxu0 0.0
    %1675 = vmatmul.mubr.f32.gmra.mxu0 %v1529
    %v1676 = vpop.f32.mrf.mxu0
    %v1677 = vadd.f32 0.0, %v1676
    %v1678 = vpop.f32.mrf.mxu0
    %v1679 = vadd.f32 0.0, %v1678
    %1680 = vdwg.mxu0
    %v1681 = vadd.f32 %v1535, %v1606
    %v1682 = vadd.f32 %v1536, %v1608
    %v1683 = vadd.f32 %v1537, %v1677
    %v1684 = vadd.f32 %v1538, %v1679
    %v1685 = vxor.u32 %v1681, 2147483648
    %v1686 = vmul.f32 %v1685, 1.442695
    %v1687 = vpow.pop %v1686
    %v1688 = vadd.f32 %v1687, 1.0
    %v1689 = vrcp.pop %v1688
    %v1690 = vmul.f32 1.0, %v1689
    %v1691 = vxor.u32 %v1682, 2147483648
    %v1692 = vmul.f32 %v1691, 1.442695
    %v1693 = vpow.pop %v1692
    %v1694 = vadd.f32 %v1693, 1.0
    %v1695 = vrcp.pop %v1694
    %v1696 = vmul.f32 1.0, %v1695
    %v1697 = vtanh.pop %v1683
    %v1698 = vxor.u32 %v1684, 2147483648
    %v1699 = vmul.f32 %v1698, 1.442695
    %v1700 = vpow.pop %v1699
    %v1701 = vadd.f32 %v1700, 1.0
    %v1702 = vrcp.pop %v1701
    %v1703 = vmul.f32 1.0, %v1702
    %v1704 = vmul.f32 %v1696, %v1527
    %v1705 = vmul.f32 %v1690, %v1697
    %v1706 = vadd.f32 %v1704, %v1705
    %v1707 = vtanh.pop %v1706
    %v1708 = vmul.f32 %v1703, %v1707
    %s1709 = scalar_lea.vmem [#allocation3], 48
    %1710 = vst [vmem:[%s1709] sm:$0xff] %v1708
    %s1711 = smul.u32 7, 4
    %s1712 = smul.addr %s1711, 8
    %s1713 = scalar_lea.vmem [#allocation2], %s1712
    %v1714 = vld [vmem:[%s1713] sm:$0xff]
    %v1715 = vld [vmem:[%s1713 + $0x8] sm:$0xff]
    %v1716 = vld [vmem:[%s1713 + $0x10] sm:$0xff]
    %v1717 = vld [vmem:[%s1713 + $0x18] sm:$0xff]
    %1718 = vmatprep.subr.mxu0 %v456
    %1719 = vmatpush1.msra.mxu0 %v455
    %1720 = vmatprep.subr.mxu0 %v452
    %1721 = vmatpush1.msra.mxu0 %v451
    %1722 = vmatprep.subr.mxu0 %v448
    %1723 = vmatpush1.msra.mxu0 %v447
    %1724 = vmatprep.subr.mxu0 %v444
    %1725 = vmatpush1.msra.mxu0 %v443
    %1726 = vmatprep.subr.mxu0 %v440
    %1727 = vmatpush1.msra.mxu0 %v439
    %1728 = vmatprep.subr.mxu0 %v436
    %1729 = vmatpush1.msra.mxu0 %v435
    %1730 = vmatprep.subr.mxu0 %v432
    %1731 = vmatpush1.msra.mxu0 %v431
    %1732 = vmatprep.subr.mxu0 %v428
    %1733 = vmatpush1.msra.mxu0 %v427
    %1734 = vmatprep.subr.mxu0 %v424
    %1735 = vmatpush1.msra.mxu0 %v423
    %1736 = vmatprep.subr.mxu0 %v420
    %1737 = vmatpush1.msra.mxu0 %v419
    %1738 = vmatprep.subr.mxu0 %v416
    %1739 = vmatpush1.msra.mxu0 %v415
    %1740 = vmatprep.subr.mxu0 %v412
    %1741 = vmatpush1.msra.mxu0 %v411
    %1742 = vmatprep.subr.mxu0 %v408
    %1743 = vmatpush1.msra.mxu0 %v407
    %1744 = vmatprep.subr.mxu0 %v404
    %1745 = vmatpush1.msra.mxu0 %v403
    %1746 = vmatprep.subr.mxu0 %v400
    %1747 = vmatpush1.msra.mxu0 %v399
    %1748 = vmatprep.subr.mxu0 %v396
    %1749 = vmatpush1.msra.mxu0 %v395
    %1750 = vmatprep.subr.mxu0 0.0
    %1751 = vmatpush2.msra.mxu0 0.0
    %1752 = vmatprep.subr.mxu0 0.0
    %1753 = vmatpush2.msra.mxu0 0.0
    %1754 = vmatprep.subr.mxu0 0.0
    %1755 = vmatpush2.msra.mxu0 0.0
    %1756 = vmatprep.subr.mxu0 0.0
    %1757 = vmatpush2.msra.mxu0 0.0
    %1758 = vmatprep.subr.mxu0 0.0
    %1759 = vmatpush2.msra.mxu0 0.0
    %1760 = vmatprep.subr.mxu0 0.0
    %1761 = vmatpush2.msra.mxu0 0.0
    %1762 = vmatprep.subr.mxu0 0.0
    %1763 = vmatpush2.msra.mxu0 0.0
    %1764 = vmatprep.subr.mxu0 0.0
    %1765 = vmatpush2.msra.mxu0 0.0
    %1766 = vmatprep.subr.mxu0 0.0
    %1767 = vmatpush2.msra.mxu0 0.0
    %1768 = vmatprep.subr.mxu0 0.0
    %1769 = vmatpush2.msra.mxu0 0.0
    %1770 = vmatprep.subr.mxu0 0.0
    %1771 = vmatpush2.msra.mxu0 0.0
    %1772 = vmatprep.subr.mxu0 0.0
    %1773 = vmatpush2.msra.mxu0 0.0
    %1774 = vmatprep.subr.mxu0 0.0
    %1775 = vmatpush2.msra.mxu0 0.0
    %1776 = vmatprep.subr.mxu0 0.0
    %1777 = vmatpush2.msra.mxu0 0.0
    %1778 = vmatprep.subr.mxu0 0.0
    %1779 = vmatpush2.msra.mxu0 0.0
    %1780 = vmatprep.subr.mxu0 0.0
    %1781 = vmatpush2.msra.mxu0 0.0
    %1782 = vmatprep.mubr.f32.mxu0 0.0
    %1783 = vmatmul.mubr.f32.gmra.mxu0 %v1708
    %v1784 = vpop.f32.mrf.mxu0
    %v1785 = vadd.f32 0.0, %v1784
    %v1786 = vpop.f32.mrf.mxu0
    %v1787 = vadd.f32 0.0, %v1786
    %1788 = vdwg.mxu0
    %1789 = vmatprep.subr.mxu0 %v458
    %1790 = vmatpush1.msra.mxu0 %v457
    %1791 = vmatprep.subr.mxu0 %v454
    %1792 = vmatpush1.msra.mxu0 %v453
    %1793 = vmatprep.subr.mxu0 %v450
    %1794 = vmatpush1.msra.mxu0 %v449
    %1795 = vmatprep.subr.mxu0 %v446
    %1796 = vmatpush1.msra.mxu0 %v445
    %1797 = vmatprep.subr.mxu0 %v442
    %1798 = vmatpush1.msra.mxu0 %v441
    %1799 = vmatprep.subr.mxu0 %v438
    %1800 = vmatpush1.msra.mxu0 %v437
    %1801 = vmatprep.subr.mxu0 %v434
    %1802 = vmatpush1.msra.mxu0 %v433
    %1803 = vmatprep.subr.mxu0 %v430
    %1804 = vmatpush1.msra.mxu0 %v429
    %1805 = vmatprep.subr.mxu0 %v426
    %1806 = vmatpush1.msra.mxu0 %v425
    %1807 = vmatprep.subr.mxu0 %v422
    %1808 = vmatpush1.msra.mxu0 %v421
    %1809 = vmatprep.subr.mxu0 %v418
    %1810 = vmatpush1.msra.mxu0 %v417
    %1811 = vmatprep.subr.mxu0 %v414
    %1812 = vmatpush1.msra.mxu0 %v413
    %1813 = vmatprep.subr.mxu0 %v410
    %1814 = vmatpush1.msra.mxu0 %v409
    %1815 = vmatprep.subr.mxu0 %v406
    %1816 = vmatpush1.msra.mxu0 %v405
    %1817 = vmatprep.subr.mxu0 %v402
    %1818 = vmatpush1.msra.mxu0 %v401
    %1819 = vmatprep.subr.mxu0 %v398
    %1820 = vmatpush1.msra.mxu0 %v397
    %1821 = vmatprep.subr.mxu0 0.0
    %1822 = vmatpush2.msra.mxu0 0.0
    %1823 = vmatprep.subr.mxu0 0.0
    %1824 = vmatpush2.msra.mxu0 0.0
    %1825 = vmatprep.subr.mxu0 0.0
    %1826 = vmatpush2.msra.mxu0 0.0
    %1827 = vmatprep.subr.mxu0 0.0
    %1828 = vmatpush2.msra.mxu0 0.0
    %1829 = vmatprep.subr.mxu0 0.0
    %1830 = vmatpush2.msra.mxu0 0.0
    %1831 = vmatprep.subr.mxu0 0.0
    %1832 = vmatpush2.msra.mxu0 0.0
    %1833 = vmatprep.subr.mxu0 0.0
    %1834 = vmatpush2.msra.mxu0 0.0
    %1835 = vmatprep.subr.mxu0 0.0
    %1836 = vmatpush2.msra.mxu0 0.0
    %1837 = vmatprep.subr.mxu0 0.0
    %1838 = vmatpush2.msra.mxu0 0.0
    %1839 = vmatprep.subr.mxu0 0.0
    %1840 = vmatpush2.msra.mxu0 0.0
    %1841 = vmatprep.subr.mxu0 0.0
    %1842 = vmatpush2.msra.mxu0 0.0
    %1843 = vmatprep.subr.mxu0 0.0
    %1844 = vmatpush2.msra.mxu0 0.0
    %1845 = vmatprep.subr.mxu0 0.0
    %1846 = vmatpush2.msra.mxu0 0.0
    %1847 = vmatprep.subr.mxu0 0.0
    %1848 = vmatpush2.msra.mxu0 0.0
    %1849 = vmatprep.subr.mxu0 0.0
    %1850 = vmatpush2.msra.mxu0 0.0
    %1851 = vmatprep.subr.mxu0 0.0
    %1852 = vmatpush2.msra.mxu0 0.0
    %1853 = vmatprep.mubr.f32.mxu0 0.0
    %1854 = vmatmul.mubr.f32.gmra.mxu0 %v1708
    %v1855 = vpop.f32.mrf.mxu0
    %v1856 = vadd.f32 0.0, %v1855
    %v1857 = vpop.f32.mrf.mxu0
    %v1858 = vadd.f32 0.0, %v1857
    %1859 = vdwg.mxu0
    %v1860 = vadd.f32 %v1714, %v1785
    %v1861 = vadd.f32 %v1715, %v1787
    %v1862 = vadd.f32 %v1716, %v1856
    %v1863 = vadd.f32 %v1717, %v1858
    %v1864 = vxor.u32 %v1860, 2147483648
    %v1865 = vmul.f32 %v1864, 1.442695
    %v1866 = vpow.pop %v1865
    %v1867 = vadd.f32 %v1866, 1.0
    %v1868 = vrcp.pop %v1867
    %v1869 = vmul.f32 1.0, %v1868
    %v1870 = vxor.u32 %v1861, 2147483648
    %v1871 = vmul.f32 %v1870, 1.442695
    %v1872 = vpow.pop %v1871
    %v1873 = vadd.f32 %v1872, 1.0
    %v1874 = vrcp.pop %v1873
    %v1875 = vmul.f32 1.0, %v1874
    %v1876 = vtanh.pop %v1862
    %v1877 = vxor.u32 %v1863, 2147483648
    %v1878 = vmul.f32 %v1877, 1.442695
    %v1879 = vpow.pop %v1878
    %v1880 = vadd.f32 %v1879, 1.0
    %v1881 = vrcp.pop %v1880
    %v1882 = vmul.f32 1.0, %v1881
    %v1883 = vmul.f32 %v1875, %v1706
    %v1884 = vmul.f32 %v1869, %v1876
    %v1885 = vadd.f32 %v1883, %v1884
    %v1886 = vtanh.pop %v1885
    %v1887 = vmul.f32 %v1882, %v1886
    %s1888 = scalar_lea.vmem [#allocation3], 56
    %1889 = vst [vmem:[%s1888] sm:$0xff] %v1887
    %v1890 = vld [vmem:[#allocation3] sm:$0xff]
    %v1891 = vld [vmem:[#allocation3 + $0x8] sm:$0xff]
    %v1892 = vld [vmem:[#allocation3 + $0x10] sm:$0xff]
    %v1893 = vld [vmem:[#allocation3 + $0x18] sm:$0xff]
    %v1894 = vld [vmem:[#allocation3 + $0x20] sm:$0xff]
    %v1895 = vld [vmem:[#allocation3 + $0x28] sm:$0xff]
    %v1896 = vld [vmem:[#allocation3 + $0x30] sm:$0xff]
    %v1897 = vld [vmem:[#allocation3 + $0x38] sm:$0xff]
    %v1898 = vld [vmem:[%s4] sm:$0xff]
    %v1899 = vld [vmem:[%s4 + $0x8] sm:$0xff]
    %v1900 = vld [vmem:[%s4 + $0x10] sm:$0xff]
    %v1901 = vld [vmem:[%s4 + $0x18] sm:$0xff]
    %v1902 = vld [vmem:[%s4 + $0x20] sm:$0xff]
    %v1903 = vld [vmem:[%s4 + $0x28] sm:$0xff]
    %v1904 = vld [vmem:[%s4 + $0x30] sm:$0xff]
    %v1905 = vld [vmem:[%s4 + $0x38] sm:$0xff]
    %v1906 = vld [vmem:[%s4 + $0x40] sm:$0xff]
    %v1907 = vld [vmem:[%s4 + $0x48] sm:$0xff]
    %v1908 = vld [vmem:[%s4 + $0x50] sm:$0xff]
    %v1909 = vld [vmem:[%s4 + $0x58] sm:$0xff]
    %v1910 = vld [vmem:[%s4 + $0x60] sm:$0xff]
    %v1911 = vld [vmem:[%s4 + $0x68] sm:$0xff]
    %v1912 = vld [vmem:[%s4 + $0x70] sm:$0xff]
    %v1913 = vld [vmem:[%s4 + $0x78] sm:$0xff]
    %v1914 = vld [vmem:[%s5] sm:$0x1]
    %v1916 = vlaneseq
    %v1917 = vshrl.u32 %v1916, 7
    %v1918 = vsub.s32 0, %v1917
    %v1919 = vrot.slane %v1914, %v1918
    %1921 = vmatprep.subr.mxu0 0.0
    %1922 = vmatpush1.msra.mxu0 %v1913
    %1923 = vmatprep.subr.mxu0 0.0
    %1924 = vmatpush1.msra.mxu0 %v1912
    %1925 = vmatprep.subr.mxu0 0.0
    %1926 = vmatpush1.msra.mxu0 %v1911
    %1927 = vmatprep.subr.mxu0 0.0
    %1928 = vmatpush1.msra.mxu0 %v1910
    %1929 = vmatprep.subr.mxu0 0.0
    %1930 = vmatpush1.msra.mxu0 %v1909
    %1931 = vmatprep.subr.mxu0 0.0
    %1932 = vmatpush1.msra.mxu0 %v1908
    %1933 = vmatprep.subr.mxu0 0.0
    %1934 = vmatpush1.msra.mxu0 %v1907
    %1935 = vmatprep.subr.mxu0 0.0
    %1936 = vmatpush1.msra.mxu0 %v1906
    %1937 = vmatprep.subr.mxu0 0.0
    %1938 = vmatpush1.msra.mxu0 %v1905
    %1939 = vmatprep.subr.mxu0 0.0
    %1940 = vmatpush1.msra.mxu0 %v1904
    %1941 = vmatprep.subr.mxu0 0.0
    %1942 = vmatpush1.msra.mxu0 %v1903
    %1943 = vmatprep.subr.mxu0 0.0
    %1944 = vmatpush1.msra.mxu0 %v1902
    %1945 = vmatprep.subr.mxu0 0.0
    %1946 = vmatpush1.msra.mxu0 %v1901
    %1947 = vmatprep.subr.mxu0 0.0
    %1948 = vmatpush1.msra.mxu0 %v1900
    %1949 = vmatprep.subr.mxu0 0.0
    %1950 = vmatpush1.msra.mxu0 %v1899
    %1951 = vmatprep.subr.mxu0 0.0
    %1952 = vmatpush1.msra.mxu0 %v1898
    %1953 = vmatprep.subr.mxu0 0.0
    %1954 = vmatpush2.msra.mxu0 0.0
    %1955 = vmatprep.subr.mxu0 0.0
    %1956 = vmatpush2.msra.mxu0 0.0
    %1957 = vmatprep.subr.mxu0 0.0
    %1958 = vmatpush2.msra.mxu0 0.0
    %1959 = vmatprep.subr.mxu0 0.0
    %1960 = vmatpush2.msra.mxu0 0.0
    %1961 = vmatprep.subr.mxu0 0.0
    %1962 = vmatpush2.msra.mxu0 0.0
    %1963 = vmatprep.subr.mxu0 0.0
    %1964 = vmatpush2.msra.mxu0 0.0
    %1965 = vmatprep.subr.mxu0 0.0
    %1966 = vmatpush2.msra.mxu0 0.0
    %1967 = vmatprep.subr.mxu0 0.0
    %1968 = vmatpush2.msra.mxu0 0.0
    %1969 = vmatprep.subr.mxu0 0.0
    %1970 = vmatpush2.msra.mxu0 0.0
    %1971 = vmatprep.subr.mxu0 0.0
    %1972 = vmatpush2.msra.mxu0 0.0
    %1973 = vmatprep.subr.mxu0 0.0
    %1974 = vmatpush2.msra.mxu0 0.0
    %1975 = vmatprep.subr.mxu0 0.0
    %1976 = vmatpush2.msra.mxu0 0.0
    %1977 = vmatprep.subr.mxu0 0.0
    %1978 = vmatpush2.msra.mxu0 0.0
    %1979 = vmatprep.subr.mxu0 0.0
    %1980 = vmatpush2.msra.mxu0 0.0
    %1981 = vmatprep.subr.mxu0 0.0
    %1982 = vmatpush2.msra.mxu0 0.0
    %1983 = vmatprep.subr.mxu0 0.0
    %1984 = vmatpush2.msra.mxu0 0.0
    %1985 = vmatprep.mubr.f32.mxu0 0.0
    %1986 = vmatmul.mubr.f32.gmra.mxu0 %v1890
    %v1987 = vpop.f32.mrf.mxu0
    %v1988 = vadd.f32 %v1919, %v1987
    %v1989 = vpop.f32.mrf.mxu0
    %1990 = vmatprep.mubr.f32.mxu0 0.0
    %1991 = vmatmul.mubr.f32.gmra.mxu0 %v1891
    %v1992 = vpop.f32.mrf.mxu0
    %v1993 = vadd.f32 %v1919, %v1992
    %v1994 = vpop.f32.mrf.mxu0
    %1995 = vmatprep.mubr.f32.mxu0 0.0
    %1996 = vmatmul.mubr.f32.gmra.mxu0 %v1892
    %v1997 = vpop.f32.mrf.mxu0
    %v1998 = vadd.f32 %v1919, %v1997
    %v1999 = vpop.f32.mrf.mxu0
    %2000 = vmatprep.mubr.f32.mxu0 0.0
    %2001 = vmatmul.mubr.f32.gmra.mxu0 %v1893
    %v2002 = vpop.f32.mrf.mxu0
    %v2003 = vadd.f32 %v1919, %v2002
    %v2004 = vpop.f32.mrf.mxu0
    %2005 = vmatprep.mubr.f32.mxu0 0.0
    %2006 = vmatmul.mubr.f32.gmra.mxu0 %v1894
    %v2007 = vpop.f32.mrf.mxu0
    %v2008 = vadd.f32 %v1919, %v2007
    %v2009 = vpop.f32.mrf.mxu0
    %2010 = vmatprep.mubr.f32.mxu0 0.0
    %2011 = vmatmul.mubr.f32.gmra.mxu0 %v1895
    %v2012 = vpop.f32.mrf.mxu0
    %v2013 = vadd.f32 %v1919, %v2012
    %v2014 = vpop.f32.mrf.mxu0
    %2015 = vmatprep.mubr.f32.mxu0 0.0
    %2016 = vmatmul.mubr.f32.gmra.mxu0 %v1896
    %v2017 = vpop.f32.mrf.mxu0
    %v2018 = vadd.f32 %v1919, %v2017
    %v2019 = vpop.f32.mrf.mxu0
    %2020 = vmatprep.mubr.f32.mxu0 0.0
    %2021 = vmatmul.mubr.f32.gmra.mxu0 %v1897
    %v2022 = vpop.f32.mrf.mxu0
    %v2023 = vadd.f32 %v1919, %v2022
    %v2024 = vpop.f32.mrf.mxu0
    %2025 = vdwg.mxu0
    %v2026 = vld [vmem:[%s6] sm:$0xff]
    %v2027 = vld [vmem:[%s6 + $0x8] sm:$0xff]
    %v2028 = vld [vmem:[%s6 + $0x10] sm:$0xff]
    %v2029 = vld [vmem:[%s6 + $0x18] sm:$0xff]
    %v2030 = vld [vmem:[%s6 + $0x20] sm:$0xff]
    %v2031 = vld [vmem:[%s6 + $0x28] sm:$0xff]
    %v2032 = vld [vmem:[%s6 + $0x30] sm:$0xff]
    %v2033 = vld [vmem:[%s6 + $0x38] sm:$0xff]
    %v2034 = vld [vmem:[%s6 + $0x40] sm:$0xff]
    %v2035 = vld [vmem:[%s6 + $0x48] sm:$0xff]
    %v2036 = vld [vmem:[%s6 + $0x50] sm:$0xff]
    %v2037 = vld [vmem:[%s6 + $0x58] sm:$0xff]
    %v2038 = vld [vmem:[%s6 + $0x60] sm:$0xff]
    %v2039 = vld [vmem:[%s6 + $0x68] sm:$0xff]
    %v2040 = vld [vmem:[%s6 + $0x70] sm:$0xff]
    %v2041 = vld [vmem:[%s6 + $0x78] sm:$0xff]
    %v2042 = vld [vmem:[%s7] sm:$0x1]
    %v2044 = vlaneseq
    %v2045 = vshrl.u32 %v2044, 7
    %v2046 = vsub.s32 0, %v2045
    %v2047 = vrot.slane %v2042, %v2046
    %2049 = vmatprep.subr.mxu0 0.0
    %2050 = vmatpush1.msra.mxu0 %v2041
    %2051 = vmatprep.subr.mxu0 0.0
    %2052 = vmatpush1.msra.mxu0 %v2040
    %2053 = vmatprep.subr.mxu0 0.0
    %2054 = vmatpush1.msra.mxu0 %v2039
    %2055 = vmatprep.subr.mxu0 0.0
    %2056 = vmatpush1.msra.mxu0 %v2038
    %2057 = vmatprep.subr.mxu0 0.0
    %2058 = vmatpush1.msra.mxu0 %v2037
    %2059 = vmatprep.subr.mxu0 0.0
    %2060 = vmatpush1.msra.mxu0 %v2036
    %2061 = vmatprep.subr.mxu0 0.0
    %2062 = vmatpush1.msra.mxu0 %v2035
    %2063 = vmatprep.subr.mxu0 0.0
    %2064 = vmatpush1.msra.mxu0 %v2034
    %2065 = vmatprep.subr.mxu0 0.0
    %2066 = vmatpush1.msra.mxu0 %v2033
    %2067 = vmatprep.subr.mxu0 0.0
    %2068 = vmatpush1.msra.mxu0 %v2032
    %2069 = vmatprep.subr.mxu0 0.0
    %2070 = vmatpush1.msra.mxu0 %v2031
    %2071 = vmatprep.subr.mxu0 0.0
    %2072 = vmatpush1.msra.mxu0 %v2030
    %2073 = vmatprep.subr.mxu0 0.0
    %2074 = vmatpush1.msra.mxu0 %v2029
    %2075 = vmatprep.subr.mxu0 0.0
    %2076 = vmatpush1.msra.mxu0 %v2028
    %2077 = vmatprep.subr.mxu0 0.0
    %2078 = vmatpush1.msra.mxu0 %v2027
    %2079 = vmatprep.subr.mxu0 0.0
    %2080 = vmatpush1.msra.mxu0 %v2026
    %2081 = vmatprep.subr.mxu0 0.0
    %2082 = vmatpush2.msra.mxu0 0.0
    %2083 = vmatprep.subr.mxu0 0.0
    %2084 = vmatpush2.msra.mxu0 0.0
    %2085 = vmatprep.subr.mxu0 0.0
    %2086 = vmatpush2.msra.mxu0 0.0
    %2087 = vmatprep.subr.mxu0 0.0
    %2088 = vmatpush2.msra.mxu0 0.0
    %2089 = vmatprep.subr.mxu0 0.0
    %2090 = vmatpush2.msra.mxu0 0.0
    %2091 = vmatprep.subr.mxu0 0.0
    %2092 = vmatpush2.msra.mxu0 0.0
    %2093 = vmatprep.subr.mxu0 0.0
    %2094 = vmatpush2.msra.mxu0 0.0
    %2095 = vmatprep.subr.mxu0 0.0
    %2096 = vmatpush2.msra.mxu0 0.0
    %2097 = vmatprep.subr.mxu0 0.0
    %2098 = vmatpush2.msra.mxu0 0.0
    %2099 = vmatprep.subr.mxu0 0.0
    %2100 = vmatpush2.msra.mxu0 0.0
    %2101 = vmatprep.subr.mxu0 0.0
    %2102 = vmatpush2.msra.mxu0 0.0
    %2103 = vmatprep.subr.mxu0 0.0
    %2104 = vmatpush2.msra.mxu0 0.0
    %2105 = vmatprep.subr.mxu0 0.0
    %2106 = vmatpush2.msra.mxu0 0.0
    %2107 = vmatprep.subr.mxu0 0.0
    %2108 = vmatpush2.msra.mxu0 0.0
    %2109 = vmatprep.subr.mxu0 0.0
    %2110 = vmatpush2.msra.mxu0 0.0
    %2111 = vmatprep.subr.mxu0 0.0
    %2112 = vmatpush2.msra.mxu0 0.0
    %2113 = vmatprep.mubr.f32.mxu0 0.0
    %2114 = vmatmul.mubr.f32.gmra.mxu0 %v1988
    %v2115 = vpop.f32.mrf.mxu0
    %v2116 = vadd.f32 %v2047, %v2115
    %v2117 = vpop.f32.mrf.mxu0
    %2118 = vmatprep.mubr.f32.mxu0 0.0
    %2119 = vmatmul.mubr.f32.gmra.mxu0 %v1993
    %v2120 = vpop.f32.mrf.mxu0
    %v2121 = vadd.f32 %v2047, %v2120
    %v2122 = vpop.f32.mrf.mxu0
    %2123 = vmatprep.mubr.f32.mxu0 0.0
    %2124 = vmatmul.mubr.f32.gmra.mxu0 %v1998
    %v2125 = vpop.f32.mrf.mxu0
    %v2126 = vadd.f32 %v2047, %v2125
    %v2127 = vpop.f32.mrf.mxu0
    %2128 = vmatprep.mubr.f32.mxu0 0.0
    %2129 = vmatmul.mubr.f32.gmra.mxu0 %v2003
    %v2130 = vpop.f32.mrf.mxu0
    %v2131 = vadd.f32 %v2047, %v2130
    %v2132 = vpop.f32.mrf.mxu0
    %2133 = vmatprep.mubr.f32.mxu0 0.0
    %2134 = vmatmul.mubr.f32.gmra.mxu0 %v2008
    %v2135 = vpop.f32.mrf.mxu0
    %v2136 = vadd.f32 %v2047, %v2135
    %v2137 = vpop.f32.mrf.mxu0
    %2138 = vmatprep.mubr.f32.mxu0 0.0
    %2139 = vmatmul.mubr.f32.gmra.mxu0 %v2013
    %v2140 = vpop.f32.mrf.mxu0
    %v2141 = vadd.f32 %v2047, %v2140
    %v2142 = vpop.f32.mrf.mxu0
    %2143 = vmatprep.mubr.f32.mxu0 0.0
    %2144 = vmatmul.mubr.f32.gmra.mxu0 %v2018
    %v2145 = vpop.f32.mrf.mxu0
    %v2146 = vadd.f32 %v2047, %v2145
    %v2147 = vpop.f32.mrf.mxu0
    %2148 = vmatprep.mubr.f32.mxu0 0.0
    %2149 = vmatmul.mubr.f32.gmra.mxu0 %v2023
    %v2150 = vpop.f32.mrf.mxu0
    %v2151 = vadd.f32 %v2047, %v2150
    %v2152 = vpop.f32.mrf.mxu0
    %2153 = vdwg.mxu0
    %2154 = vst [vmem:[%s8] sm:$0xff] %v2116
    %2155 = vst [vmem:[%s8 + $0x8] sm:$0xff] %v2121
    %2156 = vst [vmem:[%s8 + $0x10] sm:$0xff] %v2126
    %2157 = vst [vmem:[%s8 + $0x18] sm:$0xff] %v2131
    %2158 = vst [vmem:[%s8 + $0x20] sm:$0xff] %v2136
    %2159 = vst [vmem:[%s8 + $0x28] sm:$0xff] %v2141
    %2160 = vst [vmem:[%s8 + $0x30] sm:$0xff] %v2146
    %2161 = vst [vmem:[%s8 + $0x38] sm:$0xff] %v2151
    // Predicated region
    $region38: #{stackoverflow_forward.1} parent=1 // pred_check
      _
    $region39: #{stackoverflow_forward.1} parent=1 // pred_check_branch
      %2163 = sbr.rel (0) target = $region41
    $region40: #{stackoverflow_forward.1} parent=1 // pred_region
      _
    $region41: #{stackoverflow_forward.1} parent=1 // pred_fallthru
      _
    // Predicated region
    $region42: #{stackoverflow_forward.1} parent=1 // pred_check
      _
    $region43: #{stackoverflow_forward.1} parent=1 // pred_check_branch
      %2165 = sbr.rel (0) target = $region45
    $region44: #{stackoverflow_forward.1} parent=1 // pred_region
      _
    $region45: #{stackoverflow_forward.1} parent=1 // pred_fallthru
      _
    %2166 = vsyncpa [#allocation5], 1

</llo_original>
